<compile_context>
chip_gen: v5e
topology: v5e:2x2
jax: 0.10.0
libtpu: 0.0.40
codegen_flags: <defaults>
</compile_context>

<pallas_src>
import jax
import jax.numpy as jnp
from jax.experimental import pallas as pl
from jax.experimental.pallas import tpu as pltpu

EPS = 1e-5
K = 5      # Conv1d kernel_size
PAD = 2    # Conv1d padding
F = 64     # BatchNorm1d features == conv length L after transpose
FP = 72    # per-sample row stride in the slab: multiple of 8 (sublane aligned)
           # with >= PAD zero rows separating consecutive samples' data.


def _type_classifier_kernel(x_ref, scale_ref, shift_ref,
                            w1_ref, b1_ref, w2_ref, b2_ref, w3_ref, b3_ref,
                            wl_ref, bl_ref, o_ref):
    x = x_ref[...]                                    # (Bb, FP, D) f32, pad rows 0
    Bb, FPdim, D = x.shape
    rows = Bb * FPdim

    # ---- BatchNorm1d affine (per-feature, full-batch stats; zero on pad rows) ----
    xn = x * scale_ref[...][None, :, :] + shift_ref[...][None, :, :]

    # ---- Flatten to one (rows, Cin) matmul slab (FP % 8 == 0 => pure view) ----
    slab = xn.reshape(rows, D)

    # Data-row mask (1 for the 64 real positions of each sample, 0 for pad rows).
    pos = jax.lax.broadcasted_iota(jnp.int32, (Bb, FPdim, 1), 1).reshape(rows, 1)
    row_mask = (pos < F).astype(jnp.float32)          # (rows, 1)

    def conv_relu(h, w_ref, b_ref):
        # Conv1d(k=5, stride=1, pad=2) + ReLU as 5 per-tap accumulating MXU dots.
        # Shifted taps come from pltpu.roll (XLU slot); the inter-sample zero pad
        # rows provide the conv zero-padding AND isolate samples from each other
        # and from slab wrap-around (|tap offset| <= PAD <= FP - F).
        acc = None
        for k in range(K):
            d = k - PAD
            tap = h if d == 0 else pltpu.roll(h, shift=(-d) % rows, axis=0)
            part = jnp.dot(tap, w_ref[k], preferred_element_type=jnp.float32)
            acc = part if acc is None else acc + part
        # ReLU, then re-zero pad rows (they would otherwise become relu(bias)
        # and leak into the next layer's taps and the max-pool).
        return jnp.maximum(acc + b_ref[...], 0.0) * row_mask

    h = conv_relu(slab, w1_ref, b1_ref)               # (rows, 16)
    h = conv_relu(h, w2_ref, b2_ref)                  # (rows, 32)
    h = conv_relu(h, w3_ref, b3_ref)                  # (rows, 64)

    # ---- AdaptiveMaxPool1d(1): pad rows are exactly 0 and data rows are >= 0
    # (post-ReLU), so max over all FP rows of a sample == max over its 64 data
    # rows.  FP % 8 == 0 keeps the reshape a tile reinterpretation. ----
    pooled = jnp.max(h.reshape(Bb, FPdim, h.shape[1]), axis=1)        # (Bb, 64)

    # ---- Logits head: VPU multiply + lane reduce (cheaper than an N=1 matmul).
    o_ref[...] = (jnp.sum(pooled * wl_ref[...], axis=-1, keepdims=True)
                  + bl_ref[...])


def type_classifier_forward(x, params, *, block_batch=8):
    """x: (B, 64, 2) f32 -> (B, 1) f32 (training-mode BatchNorm semantics)."""
    B = x.shape[0]

    # --- BatchNorm1d(64) batch statistics (training mode, biased variance). ---
    # Full-batch reduction folded into a per-feature affine so the kernel can be
    # tiled over batch blocks without changing BN semantics.
    mean = jnp.mean(x, axis=(0, 2))                                    # (64,)
    var = jnp.mean((x - mean[None, :, None]) ** 2, axis=(0, 2))        # (64,)
    scale = params["gamma"].reshape(-1) / jnp.sqrt(var + EPS)          # (64,)
    shift = params["beta"].reshape(-1) - mean * scale                  # (64,)
    scale_p = jnp.pad(scale, (0, FP - F)).reshape(FP, 1)               # pad feats -> 0
    shift_p = jnp.pad(shift, (0, FP - F)).reshape(FP, 1)

    # --- Batch blocking (grid over batch; block rows = b_blk * FP). ---
    if B > block_batch:
        assert block_batch % 8 == 0, "block_batch must be a multiple of 8"
        b_blk = block_batch
    else:
        b_blk = B
    n_blk = pl.cdiv(B, b_blk)
    b_pad = n_blk * b_blk

    # Pad length axis 64->72 (zero inter-sample rows) and batch axis to b_pad.
    x_p = jnp.pad(x, ((0, b_pad - B), (0, FP - F), (0, 0)))

    wl_row = params["wl"].reshape(1, F)      # (1, 64) head weights for lane reduce

    const3 = lambda s: pl.BlockSpec(s, lambda i: (0, 0, 0))
    const2 = lambda s: pl.BlockSpec(s, lambda i: (0, 0))

    out = pl.pallas_call(
        _type_classifier_kernel,
        out_shape=jax.ShapeDtypeStruct((b_pad, 1), jnp.float32),
        grid=(n_blk,),
        in_specs=[
            pl.BlockSpec((b_blk, FP, 2), lambda i: (i, 0, 0)),         # x
            const2((FP, 1)), const2((FP, 1)),                          # scale, shift
            const3(params["w1"].shape), const2(params["b1"].shape),    # conv1
            const3(params["w2"].shape), const2(params["b2"].shape),    # conv2
            const3(params["w3"].shape), const2(params["b3"].shape),    # conv3
            const2((1, F)), const2((1, 1)),                            # head
        ],
        out_specs=pl.BlockSpec((b_blk, 1), lambda i: (i, 0)),
        compiler_params=pltpu.CompilerParams(
            # Batch blocks are independent: lets v7x split them across its two
            # TensorCores; harmless no-op on single-core v5e/v6e.
            dimension_semantics=("parallel",)),
    )(x_p, scale_p, shift_p,
      params["w1"], params["b1"], params["w2"], params["b2"],
      params["w3"], params["b3"], wl_row, params["bl"])
    return out[:B]


def _reference(x, params):
    """Plain-JAX reference mirroring the PyTorch forward semantics."""
    mean = jnp.mean(x, axis=(0, 2), keepdims=True)
    var = jnp.mean((x - mean) ** 2, axis=(0, 2), keepdims=True)
    gamma = params["gamma"].reshape(1, -1, 1)
    beta = params["beta"].reshape(1, -1, 1)
    h = (x - mean) / jnp.sqrt(var + EPS) * gamma + beta        # (B, 64, 2) NLC

    def conv(h, w, b):
        out = jax.lax.conv_general_dilated(
            h, w, window_strides=(1,), padding=((PAD, PAD),),
            dimension_numbers=("NWC", "WIO", "NWC"))
        return jax.nn.relu(out + b.reshape(1, 1, -1))

    h = conv(h, params["w1"], params["b1"])
    h = conv(h, params["w2"], params["b2"])
    h = conv(h, params["w3"], params["b3"])
    pooled = jnp.max(h, axis=1)                                # (B, 64)
    return pooled @ params["wl"] + params["bl"]                # (B, 1)


def _init_params(key):
    ks = jax.random.split(key, 10)
    return {
        "gamma": 1.0 + 0.1 * jax.random.normal(ks[8], (F, 1), jnp.float32),
        "beta": 0.1 * jax.random.normal(ks[9], (F, 1), jnp.float32),
        "w1": 0.1 * jax.random.normal(ks[0], (K, 2, 16), jnp.float32),
        "b1": 0.1 * jax.random.normal(ks[1], (1, 16), jnp.float32),
        "w2": 0.1 * jax.random.normal(ks[2], (K, 16, 32), jnp.float32),
        "b2": 0.1 * jax.random.normal(ks[3], (1, 32), jnp.float32),
        "w3": 0.1 * jax.random.normal(ks[4], (K, 32, 64), jnp.float32),
        "b3": 0.1 * jax.random.normal(ks[5], (1, 64), jnp.float32),
        "wl": 0.1 * jax.random.normal(ks[6], (64, 1), jnp.float32),
        "bl": 0.1 * jax.random.normal(ks[7], (1, 1), jnp.float32),
    }


if __name__ == "__main__":
    key = jax.random.PRNGKey(0)
    k_x, k_p = jax.random.split(key)
    B = 2
    # Input consistent with the module: BatchNorm1d(64) then Conv1d(in=2) after
    # transpose(1, 2) implies x has shape (B, 64, 2).
    x = jax.random.normal(k_x, (B, 64, 2), jnp.float32)
    params = _init_params(k_p)

    out = jax.block_until_ready(type_classifier_forward(x, params))
    ref = jax.block_until_ready(_reference(x, params))

    assert out.shape == (B, 1), out.shape
    assert jnp.allclose(out, ref, rtol=1e-4, atol=1e-4), (out, ref)
    print("KERNEL_OK")
</pallas_src>

<mosaic_0001>
module attributes {stable_mosaic.version = 11 : i64} {
  func.func @_type_classifier_kernel(%arg0: i32, %arg1: memref<2x72x2xf32, #tpu.memory_space<vmem>>, %arg2: memref<72x1xf32, #tpu.memory_space<vmem>>, %arg3: memref<72x1xf32, #tpu.memory_space<vmem>>, %arg4: memref<5x2x16xf32, #tpu.memory_space<vmem>>, %arg5: memref<1x16xf32, #tpu.memory_space<vmem>>, %arg6: memref<5x16x32xf32, #tpu.memory_space<vmem>>, %arg7: memref<1x32xf32, #tpu.memory_space<vmem>>, %arg8: memref<5x32x64xf32, #tpu.memory_space<vmem>>, %arg9: memref<1x64xf32, #tpu.memory_space<vmem>>, %arg10: memref<1x64xf32, #tpu.memory_space<vmem>>, %arg11: memref<1x1xf32, #tpu.memory_space<vmem>>, %arg12: memref<2x1xf32, #tpu.memory_space<vmem>>) attributes {dimension_semantics = [#tpu.dimension_semantics<parallel>], iteration_bounds = array<i64: 1>, scalar_prefetch = 0 : i64, scratch_operands = 0 : i64, tpu.core_type = #tpu.core_type<tc>, window_params = [{transform_indices = @transform_0, window_bounds = array<i64: 2, 72, 2>}, {pipeline_mode = #tpu.pipeline_mode<synchronous>, transform_indices = @transform_1, window_bounds = array<i64: 72, 1>}, {pipeline_mode = #tpu.pipeline_mode<synchronous>, transform_indices = @transform_2, window_bounds = array<i64: 72, 1>}, {pipeline_mode = #tpu.pipeline_mode<synchronous>, transform_indices = @transform_3, window_bounds = array<i64: 5, 2, 16>}, {pipeline_mode = #tpu.pipeline_mode<synchronous>, transform_indices = @transform_4, window_bounds = array<i64: 1, 16>}, {pipeline_mode = #tpu.pipeline_mode<synchronous>, transform_indices = @transform_5, window_bounds = array<i64: 5, 16, 32>}, {pipeline_mode = #tpu.pipeline_mode<synchronous>, transform_indices = @transform_6, window_bounds = array<i64: 1, 32>}, {pipeline_mode = #tpu.pipeline_mode<synchronous>, transform_indices = @transform_7, window_bounds = array<i64: 5, 32, 64>}, {pipeline_mode = #tpu.pipeline_mode<synchronous>, transform_indices = @transform_8, window_bounds = array<i64: 1, 64>}, {pipeline_mode = #tpu.pipeline_mode<synchronous>, transform_indices = @transform_9, window_bounds = array<i64: 1, 64>}, {pipeline_mode = #tpu.pipeline_mode<synchronous>, transform_indices = @transform_10, window_bounds = array<i64: 1, 1>}, {transform_indices = @transform_11, window_bounds = array<i64: 2, 1>}]} {
    %c0 = arith.constant 0 : index
    %c0_0 = arith.constant 0 : index
    %c0_1 = arith.constant 0 : index
    %0 = vector.load %arg1[%c0, %c0_0, %c0_1] : memref<2x72x2xf32, #tpu.memory_space<vmem>>, vector<2x72x2xf32>
    %c0_2 = arith.constant 0 : index
    %c0_3 = arith.constant 0 : index
    %1 = vector.load %arg2[%c0_2, %c0_3] : memref<72x1xf32, #tpu.memory_space<vmem>>, vector<72x1xf32>
    %2 = vector.shape_cast %1 : vector<72x1xf32> to vector<1x72x1xf32>
    %3 = vector.broadcast %2 : vector<1x72x1xf32> to vector<2x72x2xf32>
    %4 = arith.mulf %0, %3 : vector<2x72x2xf32>
    %c0_4 = arith.constant 0 : index
    %c0_5 = arith.constant 0 : index
    %5 = vector.load %arg3[%c0_4, %c0_5] : memref<72x1xf32, #tpu.memory_space<vmem>>, vector<72x1xf32>
    %6 = vector.shape_cast %5 : vector<72x1xf32> to vector<1x72x1xf32>
    %7 = vector.broadcast %6 : vector<1x72x1xf32> to vector<2x72x2xf32>
    %8 = arith.addf %4, %7 : vector<2x72x2xf32>
    %9 = vector.shape_cast %8 : vector<2x72x2xf32> to vector<144x2xf32>
    %10 = tpu.iota {dimensions = array<i32: 1>} : vector<2x72x1xi32>
    %11 = vector.shape_cast %10 : vector<2x72x1xi32> to vector<144x1xi32>
    %c64_i32 = arith.constant 64 : i32
    %12 = vector.broadcast %c64_i32 : i32 to vector<144x1xi32>
    %13 = arith.cmpi slt, %11, %12 : vector<144x1xi32>
    %14 = arith.extui %13 : vector<144x1xi1> to vector<144x1xi32>
    %15 = arith.sitofp %14 : vector<144x1xi32> to vector<144x1xf32>
    %c2_i32 = arith.constant 2 : i32
    %16 = tpu.dynamic_rotate %9 by %c2_i32 dim 0 : vector<144x2xf32>, i32 -> vector<144x2xf32>
    %c0_6 = arith.constant 0 : index
    %c0_7 = arith.constant 0 : index
    %c0_8 = arith.constant 0 : index
    %17 = vector.load %arg4[%c0_6, %c0_7, %c0_8] : memref<5x2x16xf32, #tpu.memory_space<vmem>>, vector<1x2x16xf32>
    %18 = vector.shape_cast %17 : vector<1x2x16xf32> to vector<2x16xf32>
    %cst = arith.constant dense<0.000000e+00> : vector<144x16xf32>
    %19 = tpu.matmul %16, %18, %cst {dimension_numbers = #tpu.dot_dimension_numbers<[1], [0], [0], [1], [0, 0, 1, 1], [], []>} : vector<144x2xf32>, vector<2x16xf32>, vector<144x16xf32> -> vector<144x16xf32>
    %c1_i32 = arith.constant 1 : i32
    %20 = tpu.dynamic_rotate %9 by %c1_i32 dim 0 : vector<144x2xf32>, i32 -> vector<144x2xf32>
    %c1 = arith.constant 1 : index
    %c0_9 = arith.constant 0 : index
    %c0_10 = arith.constant 0 : index
    %21 = vector.load %arg4[%c1, %c0_9, %c0_10] : memref<5x2x16xf32, #tpu.memory_space<vmem>>, vector<1x2x16xf32>
    %22 = vector.shape_cast %21 : vector<1x2x16xf32> to vector<2x16xf32>
    %cst_11 = arith.constant dense<0.000000e+00> : vector<144x16xf32>
    %23 = tpu.matmul %20, %22, %cst_11 {dimension_numbers = #tpu.dot_dimension_numbers<[1], [0], [0], [1], [0, 0, 1, 1], [], []>} : vector<144x2xf32>, vector<2x16xf32>, vector<144x16xf32> -> vector<144x16xf32>
    %24 = arith.addf %19, %23 : vector<144x16xf32>
    %c2 = arith.constant 2 : index
    %c0_12 = arith.constant 0 : index
    %c0_13 = arith.constant 0 : index
    %25 = vector.load %arg4[%c2, %c0_12, %c0_13] : memref<5x2x16xf32, #tpu.memory_space<vmem>>, vector<1x2x16xf32>
    %26 = vector.shape_cast %25 : vector<1x2x16xf32> to vector<2x16xf32>
    %cst_14 = arith.constant dense<0.000000e+00> : vector<144x16xf32>
    %27 = tpu.matmul %9, %26, %cst_14 {dimension_numbers = #tpu.dot_dimension_numbers<[1], [0], [0], [1], [0, 0, 1, 1], [], []>} : vector<144x2xf32>, vector<2x16xf32>, vector<144x16xf32> -> vector<144x16xf32>
    %28 = arith.addf %24, %27 : vector<144x16xf32>
    %c143_i32 = arith.constant 143 : i32
    %29 = tpu.dynamic_rotate %9 by %c143_i32 dim 0 : vector<144x2xf32>, i32 -> vector<144x2xf32>
    %c3 = arith.constant 3 : index
    %c0_15 = arith.constant 0 : index
    %c0_16 = arith.constant 0 : index
    %30 = vector.load %arg4[%c3, %c0_15, %c0_16] : memref<5x2x16xf32, #tpu.memory_space<vmem>>, vector<1x2x16xf32>
    %31 = vector.shape_cast %30 : vector<1x2x16xf32> to vector<2x16xf32>
    %cst_17 = arith.constant dense<0.000000e+00> : vector<144x16xf32>
    %32 = tpu.matmul %29, %31, %cst_17 {dimension_numbers = #tpu.dot_dimension_numbers<[1], [0], [0], [1], [0, 0, 1, 1], [], []>} : vector<144x2xf32>, vector<2x16xf32>, vector<144x16xf32> -> vector<144x16xf32>
    %33 = arith.addf %28, %32 : vector<144x16xf32>
    %c142_i32 = arith.constant 142 : i32
    %34 = tpu.dynamic_rotate %9 by %c142_i32 dim 0 : vector<144x2xf32>, i32 -> vector<144x2xf32>
    %c4 = arith.constant 4 : index
    %c0_18 = arith.constant 0 : index
    %c0_19 = arith.constant 0 : index
    %35 = vector.load %arg4[%c4, %c0_18, %c0_19] : memref<5x2x16xf32, #tpu.memory_space<vmem>>, vector<1x2x16xf32>
    %36 = vector.shape_cast %35 : vector<1x2x16xf32> to vector<2x16xf32>
    %cst_20 = arith.constant dense<0.000000e+00> : vector<144x16xf32>
    %37 = tpu.matmul %34, %36, %cst_20 {dimension_numbers = #tpu.dot_dimension_numbers<[1], [0], [0], [1], [0, 0, 1, 1], [], []>} : vector<144x2xf32>, vector<2x16xf32>, vector<144x16xf32> -> vector<144x16xf32>
    %38 = arith.addf %33, %37 : vector<144x16xf32>
    %c0_21 = arith.constant 0 : index
    %c0_22 = arith.constant 0 : index
    %39 = vector.load %arg5[%c0_21, %c0_22] : memref<1x16xf32, #tpu.memory_space<vmem>>, vector<1x16xf32>
    %40 = vector.broadcast %39 : vector<1x16xf32> to vector<144x16xf32>
    %41 = arith.addf %38, %40 : vector<144x16xf32>
    %cst_23 = arith.constant 0.000000e+00 : f32
    %42 = vector.broadcast %cst_23 : f32 to vector<144x16xf32>
    %43 = arith.maximumf %41, %42 : vector<144x16xf32>
    %44 = vector.broadcast %15 : vector<144x1xf32> to vector<144x16xf32>
    %45 = arith.mulf %43, %44 : vector<144x16xf32>
    %c2_i32_24 = arith.constant 2 : i32
    %46 = tpu.dynamic_rotate %45 by %c2_i32_24 dim 0 : vector<144x16xf32>, i32 -> vector<144x16xf32>
    %c0_25 = arith.constant 0 : index
    %c0_26 = arith.constant 0 : index
    %c0_27 = arith.constant 0 : index
    %47 = vector.load %arg6[%c0_25, %c0_26, %c0_27] : memref<5x16x32xf32, #tpu.memory_space<vmem>>, vector<1x16x32xf32>
    %48 = vector.shape_cast %47 : vector<1x16x32xf32> to vector<16x32xf32>
    %cst_28 = arith.constant dense<0.000000e+00> : vector<144x32xf32>
    %49 = tpu.matmul %46, %48, %cst_28 {dimension_numbers = #tpu.dot_dimension_numbers<[1], [0], [0], [1], [0, 0, 1, 1], [], []>} : vector<144x16xf32>, vector<16x32xf32>, vector<144x32xf32> -> vector<144x32xf32>
    %c1_i32_29 = arith.constant 1 : i32
    %50 = tpu.dynamic_rotate %45 by %c1_i32_29 dim 0 : vector<144x16xf32>, i32 -> vector<144x16xf32>
    %c1_30 = arith.constant 1 : index
    %c0_31 = arith.constant 0 : index
    %c0_32 = arith.constant 0 : index
    %51 = vector.load %arg6[%c1_30, %c0_31, %c0_32] : memref<5x16x32xf32, #tpu.memory_space<vmem>>, vector<1x16x32xf32>
    %52 = vector.shape_cast %51 : vector<1x16x32xf32> to vector<16x32xf32>
    %cst_33 = arith.constant dense<0.000000e+00> : vector<144x32xf32>
    %53 = tpu.matmul %50, %52, %cst_33 {dimension_numbers = #tpu.dot_dimension_numbers<[1], [0], [0], [1], [0, 0, 1, 1], [], []>} : vector<144x16xf32>, vector<16x32xf32>, vector<144x32xf32> -> vector<144x32xf32>
    %54 = arith.addf %49, %53 : vector<144x32xf32>
    %c2_34 = arith.constant 2 : index
    %c0_35 = arith.constant 0 : index
    %c0_36 = arith.constant 0 : index
    %55 = vector.load %arg6[%c2_34, %c0_35, %c0_36] : memref<5x16x32xf32, #tpu.memory_space<vmem>>, vector<1x16x32xf32>
    %56 = vector.shape_cast %55 : vector<1x16x32xf32> to vector<16x32xf32>
    %cst_37 = arith.constant dense<0.000000e+00> : vector<144x32xf32>
    %57 = tpu.matmul %45, %56, %cst_37 {dimension_numbers = #tpu.dot_dimension_numbers<[1], [0], [0], [1], [0, 0, 1, 1], [], []>} : vector<144x16xf32>, vector<16x32xf32>, vector<144x32xf32> -> vector<144x32xf32>
    %58 = arith.addf %54, %57 : vector<144x32xf32>
    %c143_i32_38 = arith.constant 143 : i32
    %59 = tpu.dynamic_rotate %45 by %c143_i32_38 dim 0 : vector<144x16xf32>, i32 -> vector<144x16xf32>
    %c3_39 = arith.constant 3 : index
    %c0_40 = arith.constant 0 : index
    %c0_41 = arith.constant 0 : index
    %60 = vector.load %arg6[%c3_39, %c0_40, %c0_41] : memref<5x16x32xf32, #tpu.memory_space<vmem>>, vector<1x16x32xf32>
    %61 = vector.shape_cast %60 : vector<1x16x32xf32> to vector<16x32xf32>
    %cst_42 = arith.constant dense<0.000000e+00> : vector<144x32xf32>
    %62 = tpu.matmul %59, %61, %cst_42 {dimension_numbers = #tpu.dot_dimension_numbers<[1], [0], [0], [1], [0, 0, 1, 1], [], []>} : vector<144x16xf32>, vector<16x32xf32>, vector<144x32xf32> -> vector<144x32xf32>
    %63 = arith.addf %58, %62 : vector<144x32xf32>
    %c142_i32_43 = arith.constant 142 : i32
    %64 = tpu.dynamic_rotate %45 by %c142_i32_43 dim 0 : vector<144x16xf32>, i32 -> vector<144x16xf32>
    %c4_44 = arith.constant 4 : index
    %c0_45 = arith.constant 0 : index
    %c0_46 = arith.constant 0 : index
    %65 = vector.load %arg6[%c4_44, %c0_45, %c0_46] : memref<5x16x32xf32, #tpu.memory_space<vmem>>, vector<1x16x32xf32>
    %66 = vector.shape_cast %65 : vector<1x16x32xf32> to vector<16x32xf32>
    %cst_47 = arith.constant dense<0.000000e+00> : vector<144x32xf32>
    %67 = tpu.matmul %64, %66, %cst_47 {dimension_numbers = #tpu.dot_dimension_numbers<[1], [0], [0], [1], [0, 0, 1, 1], [], []>} : vector<144x16xf32>, vector<16x32xf32>, vector<144x32xf32> -> vector<144x32xf32>
    %68 = arith.addf %63, %67 : vector<144x32xf32>
    %c0_48 = arith.constant 0 : index
    %c0_49 = arith.constant 0 : index
    %69 = vector.load %arg7[%c0_48, %c0_49] : memref<1x32xf32, #tpu.memory_space<vmem>>, vector<1x32xf32>
    %70 = vector.broadcast %69 : vector<1x32xf32> to vector<144x32xf32>
    %71 = arith.addf %68, %70 : vector<144x32xf32>
    %cst_50 = arith.constant 0.000000e+00 : f32
    %72 = vector.broadcast %cst_50 : f32 to vector<144x32xf32>
    %73 = arith.maximumf %71, %72 : vector<144x32xf32>
    %74 = vector.broadcast %15 : vector<144x1xf32> to vector<144x32xf32>
    %75 = arith.mulf %73, %74 : vector<144x32xf32>
    %c2_i32_51 = arith.constant 2 : i32
    %76 = tpu.dynamic_rotate %75 by %c2_i32_51 dim 0 : vector<144x32xf32>, i32 -> vector<144x32xf32>
    %c0_52 = arith.constant 0 : index
    %c0_53 = arith.constant 0 : index
    %c0_54 = arith.constant 0 : index
    %77 = vector.load %arg8[%c0_52, %c0_53, %c0_54] : memref<5x32x64xf32, #tpu.memory_space<vmem>>, vector<1x32x64xf32>
    %78 = vector.shape_cast %77 : vector<1x32x64xf32> to vector<32x64xf32>
    %cst_55 = arith.constant dense<0.000000e+00> : vector<144x64xf32>
    %79 = tpu.matmul %76, %78, %cst_55 {dimension_numbers = #tpu.dot_dimension_numbers<[1], [0], [0], [1], [0, 0, 1, 1], [], []>} : vector<144x32xf32>, vector<32x64xf32>, vector<144x64xf32> -> vector<144x64xf32>
    %c1_i32_56 = arith.constant 1 : i32
    %80 = tpu.dynamic_rotate %75 by %c1_i32_56 dim 0 : vector<144x32xf32>, i32 -> vector<144x32xf32>
    %c1_57 = arith.constant 1 : index
    %c0_58 = arith.constant 0 : index
    %c0_59 = arith.constant 0 : index
    %81 = vector.load %arg8[%c1_57, %c0_58, %c0_59] : memref<5x32x64xf32, #tpu.memory_space<vmem>>, vector<1x32x64xf32>
    %82 = vector.shape_cast %81 : vector<1x32x64xf32> to vector<32x64xf32>
    %cst_60 = arith.constant dense<0.000000e+00> : vector<144x64xf32>
    %83 = tpu.matmul %80, %82, %cst_60 {dimension_numbers = #tpu.dot_dimension_numbers<[1], [0], [0], [1], [0, 0, 1, 1], [], []>} : vector<144x32xf32>, vector<32x64xf32>, vector<144x64xf32> -> vector<144x64xf32>
    %84 = arith.addf %79, %83 : vector<144x64xf32>
    %c2_61 = arith.constant 2 : index
    %c0_62 = arith.constant 0 : index
    %c0_63 = arith.constant 0 : index
    %85 = vector.load %arg8[%c2_61, %c0_62, %c0_63] : memref<5x32x64xf32, #tpu.memory_space<vmem>>, vector<1x32x64xf32>
    %86 = vector.shape_cast %85 : vector<1x32x64xf32> to vector<32x64xf32>
    %cst_64 = arith.constant dense<0.000000e+00> : vector<144x64xf32>
    %87 = tpu.matmul %75, %86, %cst_64 {dimension_numbers = #tpu.dot_dimension_numbers<[1], [0], [0], [1], [0, 0, 1, 1], [], []>} : vector<144x32xf32>, vector<32x64xf32>, vector<144x64xf32> -> vector<144x64xf32>
    %88 = arith.addf %84, %87 : vector<144x64xf32>
    %c143_i32_65 = arith.constant 143 : i32
    %89 = tpu.dynamic_rotate %75 by %c143_i32_65 dim 0 : vector<144x32xf32>, i32 -> vector<144x32xf32>
    %c3_66 = arith.constant 3 : index
    %c0_67 = arith.constant 0 : index
    %c0_68 = arith.constant 0 : index
    %90 = vector.load %arg8[%c3_66, %c0_67, %c0_68] : memref<5x32x64xf32, #tpu.memory_space<vmem>>, vector<1x32x64xf32>
    %91 = vector.shape_cast %90 : vector<1x32x64xf32> to vector<32x64xf32>
    %cst_69 = arith.constant dense<0.000000e+00> : vector<144x64xf32>
    %92 = tpu.matmul %89, %91, %cst_69 {dimension_numbers = #tpu.dot_dimension_numbers<[1], [0], [0], [1], [0, 0, 1, 1], [], []>} : vector<144x32xf32>, vector<32x64xf32>, vector<144x64xf32> -> vector<144x64xf32>
    %93 = arith.addf %88, %92 : vector<144x64xf32>
    %c142_i32_70 = arith.constant 142 : i32
    %94 = tpu.dynamic_rotate %75 by %c142_i32_70 dim 0 : vector<144x32xf32>, i32 -> vector<144x32xf32>
    %c4_71 = arith.constant 4 : index
    %c0_72 = arith.constant 0 : index
    %c0_73 = arith.constant 0 : index
    %95 = vector.load %arg8[%c4_71, %c0_72, %c0_73] : memref<5x32x64xf32, #tpu.memory_space<vmem>>, vector<1x32x64xf32>
    %96 = vector.shape_cast %95 : vector<1x32x64xf32> to vector<32x64xf32>
    %cst_74 = arith.constant dense<0.000000e+00> : vector<144x64xf32>
    %97 = tpu.matmul %94, %96, %cst_74 {dimension_numbers = #tpu.dot_dimension_numbers<[1], [0], [0], [1], [0, 0, 1, 1], [], []>} : vector<144x32xf32>, vector<32x64xf32>, vector<144x64xf32> -> vector<144x64xf32>
    %98 = arith.addf %93, %97 : vector<144x64xf32>
    %c0_75 = arith.constant 0 : index
    %c0_76 = arith.constant 0 : index
    %99 = vector.load %arg9[%c0_75, %c0_76] : memref<1x64xf32, #tpu.memory_space<vmem>>, vector<1x64xf32>
    %100 = vector.broadcast %99 : vector<1x64xf32> to vector<144x64xf32>
    %101 = arith.addf %98, %100 : vector<144x64xf32>
    %cst_77 = arith.constant 0.000000e+00 : f32
    %102 = vector.broadcast %cst_77 : f32 to vector<144x64xf32>
    %103 = arith.maximumf %101, %102 : vector<144x64xf32>
    %104 = vector.broadcast %15 : vector<144x1xf32> to vector<144x64xf32>
    %105 = arith.mulf %103, %104 : vector<144x64xf32>
    %106 = vector.shape_cast %105 : vector<144x64xf32> to vector<2x72x64xf32>
    %cst_78 = arith.constant dense<0xFF800000> : vector<2x64xf32>
    %107 = vector.multi_reduction <maximumf>, %106, %cst_78 [1] : vector<2x72x64xf32> to vector<2x64xf32>
    %c0_79 = arith.constant 0 : index
    %c0_80 = arith.constant 0 : index
    %108 = vector.load %arg10[%c0_79, %c0_80] : memref<1x64xf32, #tpu.memory_space<vmem>>, vector<1x64xf32>
    %109 = vector.broadcast %108 : vector<1x64xf32> to vector<2x64xf32>
    %110 = arith.mulf %107, %109 : vector<2x64xf32>
    %cst_81 = arith.constant dense<0.000000e+00> : vector<2xf32>
    %111 = vector.multi_reduction <add>, %110, %cst_81 [1] : vector<2x64xf32> to vector<2xf32>
    %112 = vector.shape_cast %111 : vector<2xf32> to vector<2x1xf32>
    %c0_82 = arith.constant 0 : index
    %c0_83 = arith.constant 0 : index
    %113 = vector.load %arg11[%c0_82, %c0_83] : memref<1x1xf32, #tpu.memory_space<vmem>>, vector<1x1xf32>
    %114 = vector.broadcast %113 : vector<1x1xf32> to vector<2x1xf32>
    %115 = arith.addf %112, %114 : vector<2x1xf32>
    %c0_84 = arith.constant 0 : index
    %c0_85 = arith.constant 0 : index
    %116 = vector.load %arg12[%c0_84, %c0_85] : memref<2x1xf32, #tpu.memory_space<vmem>>, vector<2x1xf32>
    tpu.vector_store %arg12[%c0_84, %c0_85], %115 {strides = array<i32>} : memref<2x1xf32, #tpu.memory_space<vmem>>, vector<2x1xf32>,
    return
  }
  func.func @transform_0(%arg0: i32) -> (i32, i32, i32) {
    %c0_i32 = arith.constant 0 : i32
    %c0_i32_0 = arith.constant 0 : i32
    %c0_i32_1 = arith.constant 0 : i32
    return %arg0, %c0_i32, %c0_i32_0 : i32, i32, i32
  }
  func.func @transform_1(%arg0: i32) -> (i32, i32) {
    %c0_i32 = arith.constant 0 : i32
    %c0_i32_0 = arith.constant 0 : i32
    %c0_i32_1 = arith.constant 0 : i32
    return %c0_i32, %c0_i32_0 : i32, i32
  }
  func.func @transform_2(%arg0: i32) -> (i32, i32) {
    %c0_i32 = arith.constant 0 : i32
    %c0_i32_0 = arith.constant 0 : i32
    %c0_i32_1 = arith.constant 0 : i32
    return %c0_i32, %c0_i32_0 : i32, i32
  }
  func.func @transform_3(%arg0: i32) -> (i32, i32, i32) {
    %c0_i32 = arith.constant 0 : i32
    %c0_i32_0 = arith.constant 0 : i32
    %c0_i32_1 = arith.constant 0 : i32
    %c0_i32_2 = arith.constant 0 : i32
    return %c0_i32, %c0_i32_0, %c0_i32_1 : i32, i32, i32
  }
  func.func @transform_4(%arg0: i32) -> (i32, i32) {
    %c0_i32 = arith.constant 0 : i32
    %c0_i32_0 = arith.constant 0 : i32
    %c0_i32_1 = arith.constant 0 : i32
    return %c0_i32, %c0_i32_0 : i32, i32
  }
  func.func @transform_5(%arg0: i32) -> (i32, i32, i32) {
    %c0_i32 = arith.constant 0 : i32
    %c0_i32_0 = arith.constant 0 : i32
    %c0_i32_1 = arith.constant 0 : i32
    %c0_i32_2 = arith.constant 0 : i32
    return %c0_i32, %c0_i32_0, %c0_i32_1 : i32, i32, i32
  }
  func.func @transform_6(%arg0: i32) -> (i32, i32) {
    %c0_i32 = arith.constant 0 : i32
    %c0_i32_0 = arith.constant 0 : i32
    %c0_i32_1 = arith.constant 0 : i32
    return %c0_i32, %c0_i32_0 : i32, i32
  }
  func.func @transform_7(%arg0: i32) -> (i32, i32, i32) {
    %c0_i32 = arith.constant 0 : i32
    %c0_i32_0 = arith.constant 0 : i32
    %c0_i32_1 = arith.constant 0 : i32
    %c0_i32_2 = arith.constant 0 : i32
    return %c0_i32, %c0_i32_0, %c0_i32_1 : i32, i32, i32
  }
  func.func @transform_8(%arg0: i32) -> (i32, i32) {
    %c0_i32 = arith.constant 0 : i32
    %c0_i32_0 = arith.constant 0 : i32
    %c0_i32_1 = arith.constant 0 : i32
    return %c0_i32, %c0_i32_0 : i32, i32
  }
  func.func @transform_9(%arg0: i32) -> (i32, i32) {
    %c0_i32 = arith.constant 0 : i32
    %c0_i32_0 = arith.constant 0 : i32
    %c0_i32_1 = arith.constant 0 : i32
    return %c0_i32, %c0_i32_0 : i32, i32
  }
  func.func @transform_10(%arg0: i32) -> (i32, i32) {
    %c0_i32 = arith.constant 0 : i32
    %c0_i32_0 = arith.constant 0 : i32
    %c0_i32_1 = arith.constant 0 : i32
    return %c0_i32, %c0_i32_0 : i32, i32
  }
  func.func @transform_11(%arg0: i32) -> (i32, i32) {
    %c0_i32 = arith.constant 0 : i32
    %c0_i32_0 = arith.constant 0 : i32
    return %arg0, %c0_i32 : i32, i32
  }
}

</mosaic_0001>

<llo_original>
// kernel: tpu_custom_call.1
$region0: #{tpu_custom_call.1}
  #allocation0 [shape = 'u32[]', space=smem, size = 0x4, offset = 0x4, fixed_abs, tag = 'smem constant byte address 0x4 - core index']
  #allocation1 [shape = 'u32[72,128]{1,0:T(1,128)}', space=vmem, size = 0x9000, scoped, tag = 'internal scratch']
  #allocation2 [shape = 'f32[1,1]{1,0:T(1,128)S(1)}', space=vmem, size = 0x200, scoped, tag = 'scoped memory for tpu_custom_call.1']
  %s0 = inlined_call_operand.vmem [shape: f32[2,72,2], index: 0, kind: input, shape index: {}]
  %s1 = inlined_call_operand.vmem [shape: f32[72,1], index: 1, kind: input, shape index: {}]
  %s2 = inlined_call_operand.vmem [shape: f32[72,1], index: 2, kind: input, shape index: {}]
  %s3 = inlined_call_operand.vmem [shape: f32[5,2,16], index: 3, kind: input, shape index: {}]
  %s4 = inlined_call_operand.vmem [shape: f32[1,16], index: 4, kind: input, shape index: {}]
  %s5 = inlined_call_operand.vmem [shape: f32[5,16,32], index: 5, kind: input, shape index: {}]
  %s6 = inlined_call_operand.vmem [shape: f32[1,32], index: 6, kind: input, shape index: {}]
  %s7 = inlined_call_operand.vmem [shape: f32[5,32,64], index: 7, kind: input, shape index: {}]
  %s8 = inlined_call_operand.vmem [shape: f32[1,64], index: 8, kind: input, shape index: {}]
  %s9 = inlined_call_operand.vmem [shape: f32[1,64], index: 9, kind: input, shape index: {}]
  %s10 = inlined_call_operand.<no memory space> [shape: f32[1,1], index: 10, kind: input, shape index: {}]
  %s11 = inlined_call_operand.vmem [shape: f32[2,1], index: 11, kind: output, shape index: {}]
  %s12 = sld [smem:[#allocation0]]
  $region54: #{tpu_custom_call.1} parent=0
    _
  %s14 = ssub.s32 1, %s12
  %s15 = scalar_select 0, %s14, %s12
  %v16 = vstv %s10
  %17 = vst [vmem:[#allocation2] sm:$0x1] %v16
  // Predicated region
  $region2: #{tpu_custom_call.1} parent=0 // pred_check
    _
  $region3: #{tpu_custom_call.1} parent=0 // pred_check_branch
    %19 = sbr.rel (0) target = $region5
  $region4: #{tpu_custom_call.1} parent=0 // pred_region
    _
  $region5: #{tpu_custom_call.1} parent=0 // pred_fallthru
    _
  // Predicated region
  $region6: #{tpu_custom_call.1} parent=0 // pred_check
    _
  $region7: #{tpu_custom_call.1} parent=0 // pred_check_branch
    %21 = sbr.rel (0) target = $region9
  $region8: #{tpu_custom_call.1} parent=0 // pred_region
    _
  $region9: #{tpu_custom_call.1} parent=0 // pred_fallthru
    _
  // Predicated region
  $region10: #{tpu_custom_call.1} parent=0 // pred_check
    _
  $region11: #{tpu_custom_call.1} parent=0 // pred_check_branch
    %23 = sbr.rel (0) target = $region13
  $region12: #{tpu_custom_call.1} parent=0 // pred_region
    _
  $region13: #{tpu_custom_call.1} parent=0 // pred_fallthru
    _
  // Predicated region
  $region14: #{tpu_custom_call.1} parent=0 // pred_check
    _
  $region15: #{tpu_custom_call.1} parent=0 // pred_check_branch
    %25 = sbr.rel (0) target = $region17
  $region16: #{tpu_custom_call.1} parent=0 // pred_region
    _
  $region17: #{tpu_custom_call.1} parent=0 // pred_fallthru
    _
  // Predicated region
  $region18: #{tpu_custom_call.1} parent=0 // pred_check
    _
  $region19: #{tpu_custom_call.1} parent=0 // pred_check_branch
    %27 = sbr.rel (0) target = $region21
  $region20: #{tpu_custom_call.1} parent=0 // pred_region
    _
  $region21: #{tpu_custom_call.1} parent=0 // pred_fallthru
    _
  // Predicated region
  $region22: #{tpu_custom_call.1} parent=0 // pred_check
    _
  $region23: #{tpu_custom_call.1} parent=0 // pred_check_branch
    %29 = sbr.rel (0) target = $region25
  $region24: #{tpu_custom_call.1} parent=0 // pred_region
    _
  $region25: #{tpu_custom_call.1} parent=0 // pred_fallthru
    _
  // Predicated region
  $region26: #{tpu_custom_call.1} parent=0 // pred_check
    _
  $region27: #{tpu_custom_call.1} parent=0 // pred_check_branch
    %31 = sbr.rel (0) target = $region29
  $region28: #{tpu_custom_call.1} parent=0 // pred_region
    _
  $region29: #{tpu_custom_call.1} parent=0 // pred_fallthru
    _
  // Predicated region
  $region30: #{tpu_custom_call.1} parent=0 // pred_check
    _
  $region31: #{tpu_custom_call.1} parent=0 // pred_check_branch
    %33 = sbr.rel (0) target = $region33
  $region32: #{tpu_custom_call.1} parent=0 // pred_region
    _
  $region33: #{tpu_custom_call.1} parent=0 // pred_fallthru
    _
  // Predicated region
  $region34: #{tpu_custom_call.1} parent=0 // pred_check
    _
  $region35: #{tpu_custom_call.1} parent=0 // pred_check_branch
    %35 = sbr.rel (0) target = $region37
  $region36: #{tpu_custom_call.1} parent=0 // pred_region
    _
  $region37: #{tpu_custom_call.1} parent=0 // pred_fallthru
    _
  // Predicated region
  $region38: #{tpu_custom_call.1} parent=0 // pred_check
    _
  $region39: #{tpu_custom_call.1} parent=0 // pred_check_branch
    %37 = sbr.rel (0) target = $region41
  $region40: #{tpu_custom_call.1} parent=0 // pred_region
    _
  $region41: #{tpu_custom_call.1} parent=0 // pred_fallthru
    _
  // Predicated region
  $region42: #{tpu_custom_call.1} parent=0 // pred_check
    _
  $region43: #{tpu_custom_call.1} parent=0 // pred_check_branch
    %39 = sbr.rel (0) target = $region45
  $region44: #{tpu_custom_call.1} parent=0 // pred_region
    _
  $region45: #{tpu_custom_call.1} parent=0 // pred_fallthru
    _
  %v40 = vld [vmem:[%s0] sm:$0xff]
  %v41 = vld [vmem:[%s0 + $0x8] sm:$0xff]
  %v42 = vld [vmem:[%s0 + $0x10] sm:$0xff]
  %v43 = vld [vmem:[%s0 + $0x18] sm:$0xff]
  %v44 = vld [vmem:[%s0 + $0x20] sm:$0xff]
  %v45 = vld [vmem:[%s0 + $0x28] sm:$0xff]
  %v46 = vld [vmem:[%s0 + $0x30] sm:$0xff]
  %v47 = vld [vmem:[%s0 + $0x38] sm:$0xff]
  %v48 = vld [vmem:[%s0 + $0x40] sm:$0xff]
  %v49 = vld [vmem:[%s0 + $0x48] sm:$0xff]
  %v50 = vld [vmem:[%s0 + $0x50] sm:$0xff]
  %v51 = vld [vmem:[%s0 + $0x58] sm:$0xff]
  %v52 = vld [vmem:[%s0 + $0x60] sm:$0xff]
  %v53 = vld [vmem:[%s0 + $0x68] sm:$0xff]
  %v54 = vld [vmem:[%s0 + $0x70] sm:$0xff]
  %v55 = vld [vmem:[%s0 + $0x78] sm:$0xff]
  %v56 = vld [vmem:[%s0 + $0x80] sm:$0xff]
  %v57 = vld [vmem:[%s0 + $0x88] sm:$0xff]
  %v58 = vld [vmem:[%s1] sm:$0xff]
  %v59 = vld [vmem:[%s1 + $0x8] sm:$0xff]
  %v60 = vld [vmem:[%s1 + $0x10] sm:$0xff]
  %v61 = vld [vmem:[%s1 + $0x18] sm:$0xff]
  %v62 = vld [vmem:[%s1 + $0x20] sm:$0xff]
  %v63 = vld [vmem:[%s1 + $0x28] sm:$0xff]
  %v64 = vld [vmem:[%s1 + $0x30] sm:$0xff]
  %v65 = vld [vmem:[%s1 + $0x38] sm:$0xff]
  %v66 = vld [vmem:[%s1 + $0x40] sm:$0xff]
  %68 = vset.pattern.permute.xlu0 0
  %69 = vperm.xlu0 %68, %v58
  %v70 = vpop.permute.xlu0 %69
  %73 = vset.pattern.permute.xlu0 0
  %74 = vperm.xlu0 %73, %v59
  %v75 = vpop.permute.xlu0 %74
  %78 = vset.pattern.permute.xlu0 0
  %79 = vperm.xlu0 %78, %v60
  %v80 = vpop.permute.xlu0 %79
  %83 = vset.pattern.permute.xlu0 0
  %84 = vperm.xlu0 %83, %v61
  %v85 = vpop.permute.xlu0 %84
  %88 = vset.pattern.permute.xlu0 0
  %89 = vperm.xlu0 %88, %v62
  %v90 = vpop.permute.xlu0 %89
  %93 = vset.pattern.permute.xlu0 0
  %94 = vperm.xlu0 %93, %v63
  %v95 = vpop.permute.xlu0 %94
  %98 = vset.pattern.permute.xlu0 0
  %99 = vperm.xlu0 %98, %v64
  %v100 = vpop.permute.xlu0 %99
  %103 = vset.pattern.permute.xlu0 0
  %104 = vperm.xlu0 %103, %v65
  %v105 = vpop.permute.xlu0 %104
  %108 = vset.pattern.permute.xlu0 0
  %109 = vperm.xlu0 %108, %v66
  %v110 = vpop.permute.xlu0 %109
  %v112 = vmul.f32 %v40, %v70
  %v113 = vmul.f32 %v41, %v75
  %v114 = vmul.f32 %v42, %v80
  %v115 = vmul.f32 %v43, %v85
  %v116 = vmul.f32 %v44, %v90
  %v117 = vmul.f32 %v45, %v95
  %v118 = vmul.f32 %v46, %v100
  %v119 = vmul.f32 %v47, %v105
  %v120 = vmul.f32 %v48, %v110
  %v121 = vmul.f32 %v49, %v70
  %v122 = vmul.f32 %v50, %v75
  %v123 = vmul.f32 %v51, %v80
  %v124 = vmul.f32 %v52, %v85
  %v125 = vmul.f32 %v53, %v90
  %v126 = vmul.f32 %v54, %v95
  %v127 = vmul.f32 %v55, %v100
  %v128 = vmul.f32 %v56, %v105
  %v129 = vmul.f32 %v57, %v110
  %v130 = vld [vmem:[%s2] sm:$0xff]
  %v131 = vld [vmem:[%s2 + $0x8] sm:$0xff]
  %v132 = vld [vmem:[%s2 + $0x10] sm:$0xff]
  %v133 = vld [vmem:[%s2 + $0x18] sm:$0xff]
  %v134 = vld [vmem:[%s2 + $0x20] sm:$0xff]
  %v135 = vld [vmem:[%s2 + $0x28] sm:$0xff]
  %v136 = vld [vmem:[%s2 + $0x30] sm:$0xff]
  %v137 = vld [vmem:[%s2 + $0x38] sm:$0xff]
  %v138 = vld [vmem:[%s2 + $0x40] sm:$0xff]
  %140 = vset.pattern.permute.xlu0 0
  %141 = vperm.xlu0 %140, %v130
  %v142 = vpop.permute.xlu0 %141
  %145 = vset.pattern.permute.xlu0 0
  %146 = vperm.xlu0 %145, %v131
  %v147 = vpop.permute.xlu0 %146
  %150 = vset.pattern.permute.xlu0 0
  %151 = vperm.xlu0 %150, %v132
  %v152 = vpop.permute.xlu0 %151
  %155 = vset.pattern.permute.xlu0 0
  %156 = vperm.xlu0 %155, %v133
  %v157 = vpop.permute.xlu0 %156
  %160 = vset.pattern.permute.xlu0 0
  %161 = vperm.xlu0 %160, %v134
  %v162 = vpop.permute.xlu0 %161
  %165 = vset.pattern.permute.xlu0 0
  %166 = vperm.xlu0 %165, %v135
  %v167 = vpop.permute.xlu0 %166
  %170 = vset.pattern.permute.xlu0 0
  %171 = vperm.xlu0 %170, %v136
  %v172 = vpop.permute.xlu0 %171
  %175 = vset.pattern.permute.xlu0 0
  %176 = vperm.xlu0 %175, %v137
  %v177 = vpop.permute.xlu0 %176
  %180 = vset.pattern.permute.xlu0 0
  %181 = vperm.xlu0 %180, %v138
  %v182 = vpop.permute.xlu0 %181
  %v184 = vadd.f32 %v112, %v142
  %v185 = vadd.f32 %v113, %v147
  %v186 = vadd.f32 %v114, %v152
  %v187 = vadd.f32 %v115, %v157
  %v188 = vadd.f32 %v116, %v162
  %v189 = vadd.f32 %v117, %v167
  %v190 = vadd.f32 %v118, %v172
  %v191 = vadd.f32 %v119, %v177
  %v192 = vadd.f32 %v120, %v182
  %v193 = vadd.f32 %v121, %v142
  %v194 = vadd.f32 %v122, %v147
  %v195 = vadd.f32 %v123, %v152
  %v196 = vadd.f32 %v124, %v157
  %v197 = vadd.f32 %v125, %v162
  %v198 = vadd.f32 %v126, %v167
  %v199 = vadd.f32 %v127, %v172
  %v200 = vadd.f32 %v128, %v177
  %v201 = vadd.f32 %v129, %v182
  %v202 = vlaneseq
  %v203 = vshrl.u32 %v202, 7
  %v204 = vadd.s32 %v203, 8
  %v205 = vadd.s32 %v203, 16
  %v206 = vadd.s32 %v203, 24
  %v207 = vadd.s32 %v203, 32
  %v208 = vadd.s32 %v203, 40
  %v209 = vadd.s32 %v203, 48
  %v210 = vadd.s32 %v203, 56
  %v211 = vadd.s32 %v203, 64
  %vm212 = vcmp.lt.s32.totalorder %v203, 64
  %vm213 = vcmp.lt.s32.totalorder %v204, 64
  %vm214 = vcmp.lt.s32.totalorder %v205, 64
  %vm215 = vcmp.lt.s32.totalorder %v206, 64
  %vm216 = vcmp.lt.s32.totalorder %v207, 64
  %vm217 = vcmp.lt.s32.totalorder %v208, 64
  %vm218 = vcmp.lt.s32.totalorder %v209, 64
  %vm219 = vcmp.lt.s32.totalorder %v210, 64
  %vm220 = vcmp.lt.s32.totalorder %v211, 64
  %v221 = vsel %vm212, 1, 0
  %v222 = vsel %vm213, 1, 0
  %v223 = vsel %vm214, 1, 0
  %v224 = vsel %vm215, 1, 0
  %v225 = vsel %vm216, 1, 0
  %v226 = vsel %vm217, 1, 0
  %v227 = vsel %vm218, 1, 0
  %v228 = vsel %vm219, 1, 0
  %v229 = vsel %vm220, 1, 0
  %v230 = vcvt.s32.f32 %v221
  %v231 = vcvt.s32.f32 %v222
  %v232 = vcvt.s32.f32 %v223
  %v233 = vcvt.s32.f32 %v224
  %v234 = vcvt.s32.f32 %v225
  %v235 = vcvt.s32.f32 %v226
  %v236 = vcvt.s32.f32 %v227
  %v237 = vcvt.s32.f32 %v228
  %v238 = vcvt.s32.f32 %v229
  %v239 = vrot.slane %v184, 6
  %v240 = vrot.slane %v185, 6
  %v241 = vrot.slane %v186, 6
  %v242 = vrot.slane %v187, 6
  %v243 = vrot.slane %v188, 6
  %v244 = vrot.slane %v189, 6
  %v245 = vrot.slane %v190, 6
  %v246 = vrot.slane %v191, 6
  %v247 = vrot.slane %v192, 6
  %v248 = vrot.slane %v193, 6
  %v249 = vrot.slane %v194, 6
  %v250 = vrot.slane %v195, 6
  %v251 = vrot.slane %v196, 6
  %v252 = vrot.slane %v197, 6
  %v253 = vrot.slane %v198, 6
  %v254 = vrot.slane %v199, 6
  %v255 = vrot.slane %v200, 6
  %v256 = vrot.slane %v201, 6
  %vm257 = vcmp.lt.s32.totalorder %v203, 2
  %v258 = vsel %vm257, %v255, %v256
  %v259 = vsel %vm257, %v254, %v255
  %v260 = vsel %vm257, %v253, %v254
  %v261 = vsel %vm257, %v252, %v253
  %v262 = vsel %vm257, %v251, %v252
  %v263 = vsel %vm257, %v250, %v251
  %v264 = vsel %vm257, %v249, %v250
  %v265 = vsel %vm257, %v248, %v249
  %v266 = vsel %vm257, %v247, %v248
  %v267 = vsel %vm257, %v246, %v247
  %v268 = vsel %vm257, %v245, %v246
  %v269 = vsel %vm257, %v244, %v245
  %v270 = vsel %vm257, %v243, %v244
  %v271 = vsel %vm257, %v242, %v243
  %v272 = vsel %vm257, %v241, %v242
  %v273 = vsel %vm257, %v240, %v241
  %v274 = vsel %vm257, %v239, %v240
  %v275 = vsel %vm257, %v256, %v239
  %v276 = vld [vmem:[%s3] sm:$0x3]
  %v277 = vrot.slane %v184, 7
  %v278 = vrot.slane %v185, 7
  %v279 = vrot.slane %v186, 7
  %v280 = vrot.slane %v187, 7
  %v281 = vrot.slane %v188, 7
  %v282 = vrot.slane %v189, 7
  %v283 = vrot.slane %v190, 7
  %v284 = vrot.slane %v191, 7
  %v285 = vrot.slane %v192, 7
  %v286 = vrot.slane %v193, 7
  %v287 = vrot.slane %v194, 7
  %v288 = vrot.slane %v195, 7
  %v289 = vrot.slane %v196, 7
  %v290 = vrot.slane %v197, 7
  %v291 = vrot.slane %v198, 7
  %v292 = vrot.slane %v199, 7
  %v293 = vrot.slane %v200, 7
  %v294 = vrot.slane %v201, 7
  %vm295 = vcmp.lt.s32.totalorder %v203, 1
  %v296 = vsel %vm295, %v293, %v294
  %v297 = vsel %vm295, %v292, %v293
  %v298 = vsel %vm295, %v291, %v292
  %v299 = vsel %vm295, %v290, %v291
  %v300 = vsel %vm295, %v289, %v290
  %v301 = vsel %vm295, %v288, %v289
  %v302 = vsel %vm295, %v287, %v288
  %v303 = vsel %vm295, %v286, %v287
  %v304 = vsel %vm295, %v285, %v286
  %v305 = vsel %vm295, %v284, %v285
  %v306 = vsel %vm295, %v283, %v284
  %v307 = vsel %vm295, %v282, %v283
  %v308 = vsel %vm295, %v281, %v282
  %v309 = vsel %vm295, %v280, %v281
  %v310 = vsel %vm295, %v279, %v280
  %v311 = vsel %vm295, %v278, %v279
  %v312 = vsel %vm295, %v277, %v278
  %v313 = vsel %vm295, %v294, %v277
  %s314 = scalar_lea.vmem %s3, 2
  %v315 = vld [vmem:[%s314] sm:$0x3]
  %vm316 = vcmask 15360
  %v318 = vsel %vm316, %v313, 0
  %v321 = vsel %vm316, %v312, 0
  %v324 = vsel %vm316, %v311, 0
  %v327 = vsel %vm316, %v310, 0
  %v330 = vsel %vm316, %v309, 0
  %v333 = vsel %vm316, %v308, 0
  %v336 = vsel %vm316, %v307, 0
  %v339 = vsel %vm316, %v306, 0
  %v342 = vsel %vm316, %v305, 0
  %v345 = vsel %vm316, %v304, 0
  %v348 = vsel %vm316, %v303, 0
  %v351 = vsel %vm316, %v302, 0
  %v354 = vsel %vm316, %v301, 0
  %v357 = vsel %vm316, %v300, 0
  %v360 = vsel %vm316, %v299, 0
  %v363 = vsel %vm316, %v298, 0
  %v366 = vsel %vm316, %v297, 0
  %v369 = vsel %vm316, %v296, 0
  %vm371 = vcmask 1041408
  %v373 = vsel %vm371, %v315, 0
  %375 = vmatpush.msra.mxu0 0.0
  %376 = vmatpush.msra.mxu0 0.0
  %377 = vmatpush.msra.mxu0 0.0
  %378 = vmatpush.msra.mxu0 0.0
  %379 = vmatpush.msra.mxu0 0.0
  %380 = vmatpush.msra.mxu0 0.0
  %381 = vmatpush.msra.mxu0 0.0
  %382 = vmatpush.msra.mxu0 0.0
  %383 = vmatpush.msra.mxu0 0.0
  %384 = vmatpush.msra.mxu0 0.0
  %385 = vmatpush.msra.mxu0 0.0
  %386 = vmatpush.msra.mxu0 0.0
  %387 = vmatpush.msra.mxu0 0.0
  %388 = vmatpush.msra.mxu0 0.0
  %389 = vmatpush.msra.mxu0 0.0
  %390 = vmatpush.msra.mxu0 %v373
  %391 = vmatmul.f32.gmra.mxu0 %v318
  %v392 = vpop.f32.mrf.mxu0
  %v393 = vadd.f32 0.0, %v392
  %394 = vmatmul.f32.gmra.mxu0 %v321
  %v395 = vpop.f32.mrf.mxu0
  %v396 = vadd.f32 0.0, %v395
  %397 = vmatmul.f32.gmra.mxu0 %v324
  %v398 = vpop.f32.mrf.mxu0
  %v399 = vadd.f32 0.0, %v398
  %400 = vmatmul.f32.gmra.mxu0 %v327
  %v401 = vpop.f32.mrf.mxu0
  %v402 = vadd.f32 0.0, %v401
  %403 = vmatmul.f32.gmra.mxu0 %v330
  %v404 = vpop.f32.mrf.mxu0
  %v405 = vadd.f32 0.0, %v404
  %406 = vmatmul.f32.gmra.mxu0 %v333
  %v407 = vpop.f32.mrf.mxu0
  %v408 = vadd.f32 0.0, %v407
  %409 = vmatmul.f32.gmra.mxu0 %v336
  %v410 = vpop.f32.mrf.mxu0
  %v411 = vadd.f32 0.0, %v410
  %412 = vmatmul.f32.gmra.mxu0 %v339
  %v413 = vpop.f32.mrf.mxu0
  %v414 = vadd.f32 0.0, %v413
  %415 = vmatmul.f32.gmra.mxu0 %v342
  %v416 = vpop.f32.mrf.mxu0
  %v417 = vadd.f32 0.0, %v416
  %418 = vmatmul.f32.gmra.mxu0 %v345
  %v419 = vpop.f32.mrf.mxu0
  %v420 = vadd.f32 0.0, %v419
  %421 = vmatmul.f32.gmra.mxu0 %v348
  %v422 = vpop.f32.mrf.mxu0
  %v423 = vadd.f32 0.0, %v422
  %424 = vmatmul.f32.gmra.mxu0 %v351
  %v425 = vpop.f32.mrf.mxu0
  %v426 = vadd.f32 0.0, %v425
  %427 = vmatmul.f32.gmra.mxu0 %v354
  %v428 = vpop.f32.mrf.mxu0
  %v429 = vadd.f32 0.0, %v428
  %430 = vmatmul.f32.gmra.mxu0 %v357
  %v431 = vpop.f32.mrf.mxu0
  %v432 = vadd.f32 0.0, %v431
  %433 = vmatmul.f32.gmra.mxu0 %v360
  %v434 = vpop.f32.mrf.mxu0
  %v435 = vadd.f32 0.0, %v434
  %436 = vmatmul.f32.gmra.mxu0 %v363
  %v437 = vpop.f32.mrf.mxu0
  %v438 = vadd.f32 0.0, %v437
  %439 = vmatmul.f32.gmra.mxu0 %v366
  %v440 = vpop.f32.mrf.mxu0
  %v441 = vadd.f32 0.0, %v440
  %442 = vmatmul.f32.gmra.mxu0 %v369
  %v443 = vpop.f32.mrf.mxu0
  %v444 = vadd.f32 0.0, %v443
  %445 = vdwg.mxu0
  %v447 = vsel %vm316, %v275, 0
  %v450 = vsel %vm316, %v274, 0
  %v453 = vsel %vm316, %v273, 0
  %v456 = vsel %vm316, %v272, 0
  %v459 = vsel %vm316, %v271, 0
  %v462 = vsel %vm316, %v270, 0
  %v465 = vsel %vm316, %v269, 0
  %v468 = vsel %vm316, %v268, 0
  %v471 = vsel %vm316, %v267, 0
  %v474 = vsel %vm316, %v266, 0
  %v477 = vsel %vm316, %v265, 0
  %v480 = vsel %vm316, %v264, 0
  %v483 = vsel %vm316, %v263, 0
  %v486 = vsel %vm316, %v262, 0
  %v489 = vsel %vm316, %v261, 0
  %v492 = vsel %vm316, %v260, 0
  %v495 = vsel %vm316, %v259, 0
  %v498 = vsel %vm316, %v258, 0
  %v501 = vsel %vm371, %v276, 0
  %503 = vmatpush.msra.mxu0 0.0
  %504 = vmatpush.msra.mxu0 0.0
  %505 = vmatpush.msra.mxu0 0.0
  %506 = vmatpush.msra.mxu0 0.0
  %507 = vmatpush.msra.mxu0 0.0
  %508 = vmatpush.msra.mxu0 0.0
  %509 = vmatpush.msra.mxu0 0.0
  %510 = vmatpush.msra.mxu0 0.0
  %511 = vmatpush.msra.mxu0 0.0
  %512 = vmatpush.msra.mxu0 0.0
  %513 = vmatpush.msra.mxu0 0.0
  %514 = vmatpush.msra.mxu0 0.0
  %515 = vmatpush.msra.mxu0 0.0
  %516 = vmatpush.msra.mxu0 0.0
  %517 = vmatpush.msra.mxu0 0.0
  %518 = vmatpush.msra.mxu0 %v501
  %519 = vmatmul.f32.gmra.mxu0 %v447
  %v520 = vpop.f32.mrf.mxu0
  %v521 = vadd.f32 %v393, %v520
  %522 = vmatmul.f32.gmra.mxu0 %v450
  %v523 = vpop.f32.mrf.mxu0
  %v524 = vadd.f32 %v396, %v523
  %525 = vmatmul.f32.gmra.mxu0 %v453
  %v526 = vpop.f32.mrf.mxu0
  %v527 = vadd.f32 %v399, %v526
  %528 = vmatmul.f32.gmra.mxu0 %v456
  %v529 = vpop.f32.mrf.mxu0
  %v530 = vadd.f32 %v402, %v529
  %531 = vmatmul.f32.gmra.mxu0 %v459
  %v532 = vpop.f32.mrf.mxu0
  %v533 = vadd.f32 %v405, %v532
  %534 = vmatmul.f32.gmra.mxu0 %v462
  %v535 = vpop.f32.mrf.mxu0
  %v536 = vadd.f32 %v408, %v535
  %537 = vmatmul.f32.gmra.mxu0 %v465
  %v538 = vpop.f32.mrf.mxu0
  %v539 = vadd.f32 %v411, %v538
  %540 = vmatmul.f32.gmra.mxu0 %v468
  %v541 = vpop.f32.mrf.mxu0
  %v542 = vadd.f32 %v414, %v541
  %543 = vmatmul.f32.gmra.mxu0 %v471
  %v544 = vpop.f32.mrf.mxu0
  %v545 = vadd.f32 %v417, %v544
  %546 = vmatmul.f32.gmra.mxu0 %v474
  %v547 = vpop.f32.mrf.mxu0
  %v548 = vadd.f32 %v420, %v547
  %549 = vmatmul.f32.gmra.mxu0 %v477
  %v550 = vpop.f32.mrf.mxu0
  %v551 = vadd.f32 %v423, %v550
  %552 = vmatmul.f32.gmra.mxu0 %v480
  %v553 = vpop.f32.mrf.mxu0
  %v554 = vadd.f32 %v426, %v553
  %555 = vmatmul.f32.gmra.mxu0 %v483
  %v556 = vpop.f32.mrf.mxu0
  %v557 = vadd.f32 %v429, %v556
  %558 = vmatmul.f32.gmra.mxu0 %v486
  %v559 = vpop.f32.mrf.mxu0
  %v560 = vadd.f32 %v432, %v559
  %561 = vmatmul.f32.gmra.mxu0 %v489
  %v562 = vpop.f32.mrf.mxu0
  %v563 = vadd.f32 %v435, %v562
  %564 = vmatmul.f32.gmra.mxu0 %v492
  %v565 = vpop.f32.mrf.mxu0
  %v566 = vadd.f32 %v438, %v565
  %567 = vmatmul.f32.gmra.mxu0 %v495
  %v568 = vpop.f32.mrf.mxu0
  %v569 = vadd.f32 %v441, %v568
  %570 = vmatmul.f32.gmra.mxu0 %v498
  %v571 = vpop.f32.mrf.mxu0
  %v572 = vadd.f32 %v444, %v571
  %573 = vdwg.mxu0
  %s574 = scalar_lea.vmem %s3, 4
  %v575 = vld [vmem:[%s574] sm:$0x3]
  %v577 = vsel %vm316, %v184, 0
  %v580 = vsel %vm316, %v185, 0
  %v583 = vsel %vm316, %v186, 0
  %v586 = vsel %vm316, %v187, 0
  %v589 = vsel %vm316, %v188, 0
  %v592 = vsel %vm316, %v189, 0
  %v595 = vsel %vm316, %v190, 0
  %v598 = vsel %vm316, %v191, 0
  %v601 = vsel %vm316, %v192, 0
  %v604 = vsel %vm316, %v193, 0
  %v607 = vsel %vm316, %v194, 0
  %v610 = vsel %vm316, %v195, 0
  %v613 = vsel %vm316, %v196, 0
  %v616 = vsel %vm316, %v197, 0
  %v619 = vsel %vm316, %v198, 0
  %v622 = vsel %vm316, %v199, 0
  %v625 = vsel %vm316, %v200, 0
  %v628 = vsel %vm316, %v201, 0
  %v631 = vsel %vm371, %v575, 0
  %633 = vmatpush.msra.mxu0 0.0
  %634 = vmatpush.msra.mxu0 0.0
  %635 = vmatpush.msra.mxu0 0.0
  %636 = vmatpush.msra.mxu0 0.0
  %637 = vmatpush.msra.mxu0 0.0
  %638 = vmatpush.msra.mxu0 0.0
  %639 = vmatpush.msra.mxu0 0.0
  %640 = vmatpush.msra.mxu0 0.0
  %641 = vmatpush.msra.mxu0 0.0
  %642 = vmatpush.msra.mxu0 0.0
  %643 = vmatpush.msra.mxu0 0.0
  %644 = vmatpush.msra.mxu0 0.0
  %645 = vmatpush.msra.mxu0 0.0
  %646 = vmatpush.msra.mxu0 0.0
  %647 = vmatpush.msra.mxu0 0.0
  %648 = vmatpush.msra.mxu0 %v631
  %649 = vmatmul.f32.gmra.mxu0 %v577
  %v650 = vpop.f32.mrf.mxu0
  %v651 = vadd.f32 0.0, %v650
  %652 = vmatmul.f32.gmra.mxu0 %v580
  %v653 = vpop.f32.mrf.mxu0
  %v654 = vadd.f32 0.0, %v653
  %655 = vmatmul.f32.gmra.mxu0 %v583
  %v656 = vpop.f32.mrf.mxu0
  %v657 = vadd.f32 0.0, %v656
  %658 = vmatmul.f32.gmra.mxu0 %v586
  %v659 = vpop.f32.mrf.mxu0
  %v660 = vadd.f32 0.0, %v659
  %661 = vmatmul.f32.gmra.mxu0 %v589
  %v662 = vpop.f32.mrf.mxu0
  %v663 = vadd.f32 0.0, %v662
  %664 = vmatmul.f32.gmra.mxu0 %v592
  %v665 = vpop.f32.mrf.mxu0
  %v666 = vadd.f32 0.0, %v665
  %667 = vmatmul.f32.gmra.mxu0 %v595
  %v668 = vpop.f32.mrf.mxu0
  %v669 = vadd.f32 0.0, %v668
  %670 = vmatmul.f32.gmra.mxu0 %v598
  %v671 = vpop.f32.mrf.mxu0
  %v672 = vadd.f32 0.0, %v671
  %673 = vmatmul.f32.gmra.mxu0 %v601
  %v674 = vpop.f32.mrf.mxu0
  %v675 = vadd.f32 0.0, %v674
  %676 = vmatmul.f32.gmra.mxu0 %v604
  %v677 = vpop.f32.mrf.mxu0
  %v678 = vadd.f32 0.0, %v677
  %679 = vmatmul.f32.gmra.mxu0 %v607
  %v680 = vpop.f32.mrf.mxu0
  %v681 = vadd.f32 0.0, %v680
  %682 = vmatmul.f32.gmra.mxu0 %v610
  %v683 = vpop.f32.mrf.mxu0
  %v684 = vadd.f32 0.0, %v683
  %685 = vmatmul.f32.gmra.mxu0 %v613
  %v686 = vpop.f32.mrf.mxu0
  %v687 = vadd.f32 0.0, %v686
  %688 = vmatmul.f32.gmra.mxu0 %v616
  %v689 = vpop.f32.mrf.mxu0
  %v690 = vadd.f32 0.0, %v689
  %691 = vmatmul.f32.gmra.mxu0 %v619
  %v692 = vpop.f32.mrf.mxu0
  %v693 = vadd.f32 0.0, %v692
  %694 = vmatmul.f32.gmra.mxu0 %v622
  %v695 = vpop.f32.mrf.mxu0
  %v696 = vadd.f32 0.0, %v695
  %697 = vmatmul.f32.gmra.mxu0 %v625
  %v698 = vpop.f32.mrf.mxu0
  %v699 = vadd.f32 0.0, %v698
  %700 = vmatmul.f32.gmra.mxu0 %v628
  %v701 = vpop.f32.mrf.mxu0
  %v702 = vadd.f32 0.0, %v701
  %703 = vdwg.mxu0
  %v704 = vadd.f32 %v521, %v651
  %v705 = vadd.f32 %v524, %v654
  %v706 = vadd.f32 %v527, %v657
  %v707 = vadd.f32 %v530, %v660
  %v708 = vadd.f32 %v533, %v663
  %v709 = vadd.f32 %v536, %v666
  %v710 = vadd.f32 %v539, %v669
  %v711 = vadd.f32 %v542, %v672
  %v712 = vadd.f32 %v545, %v675
  %v713 = vadd.f32 %v548, %v678
  %v714 = vadd.f32 %v551, %v681
  %v715 = vadd.f32 %v554, %v684
  %v716 = vadd.f32 %v557, %v687
  %v717 = vadd.f32 %v560, %v690
  %v718 = vadd.f32 %v563, %v693
  %v719 = vadd.f32 %v566, %v696
  %v720 = vadd.f32 %v569, %v699
  %v721 = vadd.f32 %v572, %v702
  %v722 = vrot.slane %v184, 1
  %v723 = vrot.slane %v185, 1
  %v724 = vrot.slane %v186, 1
  %v725 = vrot.slane %v187, 1
  %v726 = vrot.slane %v188, 1
  %v727 = vrot.slane %v189, 1
  %v728 = vrot.slane %v190, 1
  %v729 = vrot.slane %v191, 1
  %v730 = vrot.slane %v192, 1
  %v731 = vrot.slane %v193, 1
  %v732 = vrot.slane %v194, 1
  %v733 = vrot.slane %v195, 1
  %v734 = vrot.slane %v196, 1
  %v735 = vrot.slane %v197, 1
  %v736 = vrot.slane %v198, 1
  %v737 = vrot.slane %v199, 1
  %v738 = vrot.slane %v200, 1
  %v739 = vrot.slane %v201, 1
  %vm740 = vcmp.lt.s32.totalorder %v203, 7
  %v741 = vsel %vm740, %v738, %v739
  %v742 = vsel %vm740, %v737, %v738
  %v743 = vsel %vm740, %v736, %v737
  %v744 = vsel %vm740, %v735, %v736
  %v745 = vsel %vm740, %v734, %v735
  %v746 = vsel %vm740, %v733, %v734
  %v747 = vsel %vm740, %v732, %v733
  %v748 = vsel %vm740, %v731, %v732
  %v749 = vsel %vm740, %v730, %v731
  %v750 = vsel %vm740, %v729, %v730
  %v751 = vsel %vm740, %v728, %v729
  %v752 = vsel %vm740, %v727, %v728
  %v753 = vsel %vm740, %v726, %v727
  %v754 = vsel %vm740, %v725, %v726
  %v755 = vsel %vm740, %v724, %v725
  %v756 = vsel %vm740, %v723, %v724
  %v757 = vsel %vm740, %v722, %v723
  %v758 = vsel %vm740, %v739, %v722
  %s759 = scalar_lea.vmem %s3, 6
  %v760 = vld [vmem:[%s759] sm:$0x3]
  %v762 = vsel %vm316, %v757, 0
  %v765 = vsel %vm316, %v756, 0
  %v768 = vsel %vm316, %v755, 0
  %v771 = vsel %vm316, %v754, 0
  %v774 = vsel %vm316, %v753, 0
  %v777 = vsel %vm316, %v752, 0
  %v780 = vsel %vm316, %v751, 0
  %v783 = vsel %vm316, %v750, 0
  %v786 = vsel %vm316, %v749, 0
  %v789 = vsel %vm316, %v748, 0
  %v792 = vsel %vm316, %v747, 0
  %v795 = vsel %vm316, %v746, 0
  %v798 = vsel %vm316, %v745, 0
  %v801 = vsel %vm316, %v744, 0
  %v804 = vsel %vm316, %v743, 0
  %v807 = vsel %vm316, %v742, 0
  %v810 = vsel %vm316, %v741, 0
  %v813 = vsel %vm316, %v758, 0
  %v816 = vsel %vm371, %v760, 0
  %818 = vmatpush.msra.mxu0 0.0
  %819 = vmatpush.msra.mxu0 0.0
  %820 = vmatpush.msra.mxu0 0.0
  %821 = vmatpush.msra.mxu0 0.0
  %822 = vmatpush.msra.mxu0 0.0
  %823 = vmatpush.msra.mxu0 0.0
  %824 = vmatpush.msra.mxu0 0.0
  %825 = vmatpush.msra.mxu0 0.0
  %826 = vmatpush.msra.mxu0 0.0
  %827 = vmatpush.msra.mxu0 0.0
  %828 = vmatpush.msra.mxu0 0.0
  %829 = vmatpush.msra.mxu0 0.0
  %830 = vmatpush.msra.mxu0 0.0
  %831 = vmatpush.msra.mxu0 0.0
  %832 = vmatpush.msra.mxu0 0.0
  %833 = vmatpush.msra.mxu0 %v816
  %834 = vmatmul.f32.gmra.mxu0 %v762
  %v835 = vpop.f32.mrf.mxu0
  %v836 = vadd.f32 0.0, %v835
  %837 = vmatmul.f32.gmra.mxu0 %v765
  %v838 = vpop.f32.mrf.mxu0
  %v839 = vadd.f32 0.0, %v838
  %840 = vmatmul.f32.gmra.mxu0 %v768
  %v841 = vpop.f32.mrf.mxu0
  %v842 = vadd.f32 0.0, %v841
  %843 = vmatmul.f32.gmra.mxu0 %v771
  %v844 = vpop.f32.mrf.mxu0
  %v845 = vadd.f32 0.0, %v844
  %846 = vmatmul.f32.gmra.mxu0 %v774
  %v847 = vpop.f32.mrf.mxu0
  %v848 = vadd.f32 0.0, %v847
  %849 = vmatmul.f32.gmra.mxu0 %v777
  %v850 = vpop.f32.mrf.mxu0
  %v851 = vadd.f32 0.0, %v850
  %852 = vmatmul.f32.gmra.mxu0 %v780
  %v853 = vpop.f32.mrf.mxu0
  %v854 = vadd.f32 0.0, %v853
  %855 = vmatmul.f32.gmra.mxu0 %v783
  %v856 = vpop.f32.mrf.mxu0
  %v857 = vadd.f32 0.0, %v856
  %858 = vmatmul.f32.gmra.mxu0 %v786
  %v859 = vpop.f32.mrf.mxu0
  %v860 = vadd.f32 0.0, %v859
  %861 = vmatmul.f32.gmra.mxu0 %v789
  %v862 = vpop.f32.mrf.mxu0
  %v863 = vadd.f32 0.0, %v862
  %864 = vmatmul.f32.gmra.mxu0 %v792
  %v865 = vpop.f32.mrf.mxu0
  %v866 = vadd.f32 0.0, %v865
  %867 = vmatmul.f32.gmra.mxu0 %v795
  %v868 = vpop.f32.mrf.mxu0
  %v869 = vadd.f32 0.0, %v868
  %870 = vmatmul.f32.gmra.mxu0 %v798
  %v871 = vpop.f32.mrf.mxu0
  %v872 = vadd.f32 0.0, %v871
  %873 = vmatmul.f32.gmra.mxu0 %v801
  %v874 = vpop.f32.mrf.mxu0
  %v875 = vadd.f32 0.0, %v874
  %876 = vmatmul.f32.gmra.mxu0 %v804
  %v877 = vpop.f32.mrf.mxu0
  %v878 = vadd.f32 0.0, %v877
  %879 = vmatmul.f32.gmra.mxu0 %v807
  %v880 = vpop.f32.mrf.mxu0
  %v881 = vadd.f32 0.0, %v880
  %882 = vmatmul.f32.gmra.mxu0 %v810
  %v883 = vpop.f32.mrf.mxu0
  %v884 = vadd.f32 0.0, %v883
  %885 = vmatmul.f32.gmra.mxu0 %v813
  %v886 = vpop.f32.mrf.mxu0
  %v887 = vadd.f32 0.0, %v886
  %888 = vdwg.mxu0
  %v889 = vadd.f32 %v704, %v836
  %v890 = vadd.f32 %v705, %v839
  %v891 = vadd.f32 %v706, %v842
  %v892 = vadd.f32 %v707, %v845
  %v893 = vadd.f32 %v708, %v848
  %v894 = vadd.f32 %v709, %v851
  %v895 = vadd.f32 %v710, %v854
  %v896 = vadd.f32 %v711, %v857
  %v897 = vadd.f32 %v712, %v860
  %v898 = vadd.f32 %v713, %v863
  %v899 = vadd.f32 %v714, %v866
  %v900 = vadd.f32 %v715, %v869
  %v901 = vadd.f32 %v716, %v872
  %v902 = vadd.f32 %v717, %v875
  %v903 = vadd.f32 %v718, %v878
  %v904 = vadd.f32 %v719, %v881
  %v905 = vadd.f32 %v720, %v884
  %v906 = vadd.f32 %v721, %v887
  %v907 = vrot.slane %v184, 2
  %v908 = vrot.slane %v185, 2
  %v909 = vrot.slane %v186, 2
  %v910 = vrot.slane %v187, 2
  %v911 = vrot.slane %v188, 2
  %v912 = vrot.slane %v189, 2
  %v913 = vrot.slane %v190, 2
  %v914 = vrot.slane %v191, 2
  %v915 = vrot.slane %v192, 2
  %v916 = vrot.slane %v193, 2
  %v917 = vrot.slane %v194, 2
  %v918 = vrot.slane %v195, 2
  %v919 = vrot.slane %v196, 2
  %v920 = vrot.slane %v197, 2
  %v921 = vrot.slane %v198, 2
  %v922 = vrot.slane %v199, 2
  %v923 = vrot.slane %v200, 2
  %v924 = vrot.slane %v201, 2
  %vm925 = vcmp.lt.s32.totalorder %v203, 6
  %v926 = vsel %vm925, %v923, %v924
  %v927 = vsel %vm925, %v922, %v923
  %v928 = vsel %vm925, %v921, %v922
  %v929 = vsel %vm925, %v920, %v921
  %v930 = vsel %vm925, %v919, %v920
  %v931 = vsel %vm925, %v918, %v919
  %v932 = vsel %vm925, %v917, %v918
  %v933 = vsel %vm925, %v916, %v917
  %v934 = vsel %vm925, %v915, %v916
  %v935 = vsel %vm925, %v914, %v915
  %v936 = vsel %vm925, %v913, %v914
  %v937 = vsel %vm925, %v912, %v913
  %v938 = vsel %vm925, %v911, %v912
  %v939 = vsel %vm925, %v910, %v911
  %v940 = vsel %vm925, %v909, %v910
  %v941 = vsel %vm925, %v908, %v909
  %v942 = vsel %vm925, %v907, %v908
  %v943 = vsel %vm925, %v924, %v907
  %s944 = scalar_lea.vmem %s3, 8
  %v945 = vld [vmem:[%s944] sm:$0x3]
  %v947 = vsel %vm316, %v942, 0
  %v950 = vsel %vm316, %v941, 0
  %v953 = vsel %vm316, %v940, 0
  %v956 = vsel %vm316, %v939, 0
  %v959 = vsel %vm316, %v938, 0
  %v962 = vsel %vm316, %v937, 0
  %v965 = vsel %vm316, %v936, 0
  %v968 = vsel %vm316, %v935, 0
  %v971 = vsel %vm316, %v934, 0
  %v974 = vsel %vm316, %v933, 0
  %v977 = vsel %vm316, %v932, 0
  %v980 = vsel %vm316, %v931, 0
  %v983 = vsel %vm316, %v930, 0
  %v986 = vsel %vm316, %v929, 0
  %v989 = vsel %vm316, %v928, 0
  %v992 = vsel %vm316, %v927, 0
  %v995 = vsel %vm316, %v926, 0
  %v998 = vsel %vm316, %v943, 0
  %v1001 = vsel %vm371, %v945, 0
  %1003 = vmatpush.msra.mxu0 0.0
  %1004 = vmatpush.msra.mxu0 0.0
  %1005 = vmatpush.msra.mxu0 0.0
  %1006 = vmatpush.msra.mxu0 0.0
  %1007 = vmatpush.msra.mxu0 0.0
  %1008 = vmatpush.msra.mxu0 0.0
  %1009 = vmatpush.msra.mxu0 0.0
  %1010 = vmatpush.msra.mxu0 0.0
  %1011 = vmatpush.msra.mxu0 0.0
  %1012 = vmatpush.msra.mxu0 0.0
  %1013 = vmatpush.msra.mxu0 0.0
  %1014 = vmatpush.msra.mxu0 0.0
  %1015 = vmatpush.msra.mxu0 0.0
  %1016 = vmatpush.msra.mxu0 0.0
  %1017 = vmatpush.msra.mxu0 0.0
  %1018 = vmatpush.msra.mxu0 %v1001
  %1019 = vmatmul.f32.gmra.mxu0 %v947
  %v1020 = vpop.f32.mrf.mxu0
  %v1021 = vadd.f32 0.0, %v1020
  %1022 = vmatmul.f32.gmra.mxu0 %v950
  %v1023 = vpop.f32.mrf.mxu0
  %v1024 = vadd.f32 0.0, %v1023
  %1025 = vmatmul.f32.gmra.mxu0 %v953
  %v1026 = vpop.f32.mrf.mxu0
  %v1027 = vadd.f32 0.0, %v1026
  %1028 = vmatmul.f32.gmra.mxu0 %v956
  %v1029 = vpop.f32.mrf.mxu0
  %v1030 = vadd.f32 0.0, %v1029
  %1031 = vmatmul.f32.gmra.mxu0 %v959
  %v1032 = vpop.f32.mrf.mxu0
  %v1033 = vadd.f32 0.0, %v1032
  %1034 = vmatmul.f32.gmra.mxu0 %v962
  %v1035 = vpop.f32.mrf.mxu0
  %v1036 = vadd.f32 0.0, %v1035
  %1037 = vmatmul.f32.gmra.mxu0 %v965
  %v1038 = vpop.f32.mrf.mxu0
  %v1039 = vadd.f32 0.0, %v1038
  %1040 = vmatmul.f32.gmra.mxu0 %v968
  %v1041 = vpop.f32.mrf.mxu0
  %v1042 = vadd.f32 0.0, %v1041
  %1043 = vmatmul.f32.gmra.mxu0 %v971
  %v1044 = vpop.f32.mrf.mxu0
  %v1045 = vadd.f32 0.0, %v1044
  %1046 = vmatmul.f32.gmra.mxu0 %v974
  %v1047 = vpop.f32.mrf.mxu0
  %v1048 = vadd.f32 0.0, %v1047
  %1049 = vmatmul.f32.gmra.mxu0 %v977
  %v1050 = vpop.f32.mrf.mxu0
  %v1051 = vadd.f32 0.0, %v1050
  %1052 = vmatmul.f32.gmra.mxu0 %v980
  %v1053 = vpop.f32.mrf.mxu0
  %v1054 = vadd.f32 0.0, %v1053
  %1055 = vmatmul.f32.gmra.mxu0 %v983
  %v1056 = vpop.f32.mrf.mxu0
  %v1057 = vadd.f32 0.0, %v1056
  %1058 = vmatmul.f32.gmra.mxu0 %v986
  %v1059 = vpop.f32.mrf.mxu0
  %v1060 = vadd.f32 0.0, %v1059
  %1061 = vmatmul.f32.gmra.mxu0 %v989
  %v1062 = vpop.f32.mrf.mxu0
  %v1063 = vadd.f32 0.0, %v1062
  %1064 = vmatmul.f32.gmra.mxu0 %v992
  %v1065 = vpop.f32.mrf.mxu0
  %v1066 = vadd.f32 0.0, %v1065
  %1067 = vmatmul.f32.gmra.mxu0 %v995
  %v1068 = vpop.f32.mrf.mxu0
  %v1069 = vadd.f32 0.0, %v1068
  %1070 = vmatmul.f32.gmra.mxu0 %v998
  %v1071 = vpop.f32.mrf.mxu0
  %v1072 = vadd.f32 0.0, %v1071
  %1073 = vdwg.mxu0
  %v1074 = vadd.f32 %v889, %v1021
  %v1075 = vadd.f32 %v890, %v1024
  %v1076 = vadd.f32 %v891, %v1027
  %v1077 = vadd.f32 %v892, %v1030
  %v1078 = vadd.f32 %v893, %v1033
  %v1079 = vadd.f32 %v894, %v1036
  %v1080 = vadd.f32 %v895, %v1039
  %v1081 = vadd.f32 %v896, %v1042
  %v1082 = vadd.f32 %v897, %v1045
  %v1083 = vadd.f32 %v898, %v1048
  %v1084 = vadd.f32 %v899, %v1051
  %v1085 = vadd.f32 %v900, %v1054
  %v1086 = vadd.f32 %v901, %v1057
  %v1087 = vadd.f32 %v902, %v1060
  %v1088 = vadd.f32 %v903, %v1063
  %v1089 = vadd.f32 %v904, %v1066
  %v1090 = vadd.f32 %v905, %v1069
  %v1091 = vadd.f32 %v906, %v1072
  %v1092 = vld [vmem:[%s4] sm:$0x1]
  %v1094 = vperm.slane %v1092, 0
  %v1096 = vadd.f32 %v1074, %v1094
  %v1097 = vadd.f32 %v1075, %v1094
  %v1098 = vadd.f32 %v1076, %v1094
  %v1099 = vadd.f32 %v1077, %v1094
  %v1100 = vadd.f32 %v1078, %v1094
  %v1101 = vadd.f32 %v1079, %v1094
  %v1102 = vadd.f32 %v1080, %v1094
  %v1103 = vadd.f32 %v1081, %v1094
  %v1104 = vadd.f32 %v1082, %v1094
  %v1105 = vadd.f32 %v1083, %v1094
  %v1106 = vadd.f32 %v1084, %v1094
  %v1107 = vadd.f32 %v1085, %v1094
  %v1108 = vadd.f32 %v1086, %v1094
  %v1109 = vadd.f32 %v1087, %v1094
  %v1110 = vadd.f32 %v1088, %v1094
  %v1111 = vadd.f32 %v1089, %v1094
  %v1112 = vadd.f32 %v1090, %v1094
  %v1113 = vadd.f32 %v1091, %v1094
  %v1114 = vmax.f32 %v1096, 0.0
  %v1115 = vmax.f32 %v1097, 0.0
  %v1116 = vmax.f32 %v1098, 0.0
  %v1117 = vmax.f32 %v1099, 0.0
  %v1118 = vmax.f32 %v1100, 0.0
  %v1119 = vmax.f32 %v1101, 0.0
  %v1120 = vmax.f32 %v1102, 0.0
  %v1121 = vmax.f32 %v1103, 0.0
  %v1122 = vmax.f32 %v1104, 0.0
  %v1123 = vmax.f32 %v1105, 0.0
  %v1124 = vmax.f32 %v1106, 0.0
  %v1125 = vmax.f32 %v1107, 0.0
  %v1126 = vmax.f32 %v1108, 0.0
  %v1127 = vmax.f32 %v1109, 0.0
  %v1128 = vmax.f32 %v1110, 0.0
  %v1129 = vmax.f32 %v1111, 0.0
  %v1130 = vmax.f32 %v1112, 0.0
  %v1131 = vmax.f32 %v1113, 0.0
  %v1132 = vmul.f32 %v1114, %v230
  %v1133 = vmul.f32 %v1115, %v231
  %v1134 = vmul.f32 %v1116, %v232
  %v1135 = vmul.f32 %v1117, %v233
  %v1136 = vmul.f32 %v1118, %v234
  %v1137 = vmul.f32 %v1119, %v235
  %v1138 = vmul.f32 %v1120, %v236
  %v1139 = vmul.f32 %v1121, %v237
  %v1140 = vmul.f32 %v1122, %v238
  %v1141 = vmul.f32 %v1123, %v230
  %v1142 = vmul.f32 %v1124, %v231
  %v1143 = vmul.f32 %v1125, %v232
  %v1144 = vmul.f32 %v1126, %v233
  %v1145 = vmul.f32 %v1127, %v234
  %v1146 = vmul.f32 %v1128, %v235
  %v1147 = vmul.f32 %v1129, %v236
  %v1148 = vmul.f32 %v1130, %v237
  %v1149 = vmul.f32 %v1131, %v238
  %v1150 = vrot.slane %v1132, 6
  %v1151 = vrot.slane %v1133, 6
  %v1152 = vrot.slane %v1134, 6
  %v1153 = vrot.slane %v1135, 6
  %v1154 = vrot.slane %v1136, 6
  %v1155 = vrot.slane %v1137, 6
  %v1156 = vrot.slane %v1138, 6
  %v1157 = vrot.slane %v1139, 6
  %v1158 = vrot.slane %v1140, 6
  %v1159 = vrot.slane %v1141, 6
  %v1160 = vrot.slane %v1142, 6
  %v1161 = vrot.slane %v1143, 6
  %v1162 = vrot.slane %v1144, 6
  %v1163 = vrot.slane %v1145, 6
  %v1164 = vrot.slane %v1146, 6
  %v1165 = vrot.slane %v1147, 6
  %v1166 = vrot.slane %v1148, 6
  %v1167 = vrot.slane %v1149, 6
  %v1168 = vsel %vm257, %v1166, %v1167
  %v1169 = vsel %vm257, %v1165, %v1166
  %v1170 = vsel %vm257, %v1164, %v1165
  %v1171 = vsel %vm257, %v1163, %v1164
  %v1172 = vsel %vm257, %v1162, %v1163
  %v1173 = vsel %vm257, %v1161, %v1162
  %v1174 = vsel %vm257, %v1160, %v1161
  %v1175 = vsel %vm257, %v1159, %v1160
  %v1176 = vsel %vm257, %v1158, %v1159
  %v1177 = vsel %vm257, %v1157, %v1158
  %v1178 = vsel %vm257, %v1156, %v1157
  %v1179 = vsel %vm257, %v1155, %v1156
  %v1180 = vsel %vm257, %v1154, %v1155
  %v1181 = vsel %vm257, %v1153, %v1154
  %v1182 = vsel %vm257, %v1152, %v1153
  %v1183 = vsel %vm257, %v1151, %v1152
  %v1184 = vsel %vm257, %v1150, %v1151
  %v1185 = vsel %vm257, %v1167, %v1150
  %v1186 = vld [vmem:[%s5] sm:$0xff]
  %v1187 = vld [vmem:[%s5 + $0x8] sm:$0xff]
  %v1188 = vrot.slane %v1132, 7
  %v1189 = vrot.slane %v1133, 7
  %v1190 = vrot.slane %v1134, 7
  %v1191 = vrot.slane %v1135, 7
  %v1192 = vrot.slane %v1136, 7
  %v1193 = vrot.slane %v1137, 7
  %v1194 = vrot.slane %v1138, 7
  %v1195 = vrot.slane %v1139, 7
  %v1196 = vrot.slane %v1140, 7
  %v1197 = vrot.slane %v1141, 7
  %v1198 = vrot.slane %v1142, 7
  %v1199 = vrot.slane %v1143, 7
  %v1200 = vrot.slane %v1144, 7
  %v1201 = vrot.slane %v1145, 7
  %v1202 = vrot.slane %v1146, 7
  %v1203 = vrot.slane %v1147, 7
  %v1204 = vrot.slane %v1148, 7
  %v1205 = vrot.slane %v1149, 7
  %v1206 = vsel %vm295, %v1204, %v1205
  %v1207 = vsel %vm295, %v1203, %v1204
  %v1208 = vsel %vm295, %v1202, %v1203
  %v1209 = vsel %vm295, %v1201, %v1202
  %v1210 = vsel %vm295, %v1200, %v1201
  %v1211 = vsel %vm295, %v1199, %v1200
  %v1212 = vsel %vm295, %v1198, %v1199
  %v1213 = vsel %vm295, %v1197, %v1198
  %v1214 = vsel %vm295, %v1196, %v1197
  %v1215 = vsel %vm295, %v1195, %v1196
  %v1216 = vsel %vm295, %v1194, %v1195
  %v1217 = vsel %vm295, %v1193, %v1194
  %v1218 = vsel %vm295, %v1192, %v1193
  %v1219 = vsel %vm295, %v1191, %v1192
  %v1220 = vsel %vm295, %v1190, %v1191
  %v1221 = vsel %vm295, %v1189, %v1190
  %v1222 = vsel %vm295, %v1188, %v1189
  %v1223 = vsel %vm295, %v1205, %v1188
  %s1224 = scalar_lea.vmem %s5, 16
  %v1225 = vld [vmem:[%s1224] sm:$0xff]
  %v1226 = vld [vmem:[%s1224 + $0x8] sm:$0xff]
  %vm1227 = vcmask 130048
  %v1229 = vsel %vm1227, %v1223, 0
  %v1232 = vsel %vm1227, %v1222, 0
  %v1235 = vsel %vm1227, %v1221, 0
  %v1238 = vsel %vm1227, %v1220, 0
  %v1241 = vsel %vm1227, %v1219, 0
  %v1244 = vsel %vm1227, %v1218, 0
  %v1247 = vsel %vm1227, %v1217, 0
  %v1250 = vsel %vm1227, %v1216, 0
  %v1253 = vsel %vm1227, %v1215, 0
  %v1256 = vsel %vm1227, %v1214, 0
  %v1259 = vsel %vm1227, %v1213, 0
  %v1262 = vsel %vm1227, %v1212, 0
  %v1265 = vsel %vm1227, %v1211, 0
  %v1268 = vsel %vm1227, %v1210, 0
  %v1271 = vsel %vm1227, %v1209, 0
  %v1274 = vsel %vm1227, %v1208, 0
  %v1277 = vsel %vm1227, %v1207, 0
  %v1280 = vsel %vm1227, %v1206, 0
  %1282 = vmatpush.msra.mxu0 0.0
  %1283 = vmatpush.msra.mxu0 0.0
  %1284 = vmatpush.msra.mxu0 0.0
  %1285 = vmatpush.msra.mxu0 0.0
  %1286 = vmatpush.msra.mxu0 0.0
  %1287 = vmatpush.msra.mxu0 0.0
  %1288 = vmatpush.msra.mxu0 0.0
  %1289 = vmatpush.msra.mxu0 0.0
  %1290 = vmatpush.msra.mxu0 0.0
  %1291 = vmatpush.msra.mxu0 0.0
  %1292 = vmatpush.msra.mxu0 0.0
  %1293 = vmatpush.msra.mxu0 0.0
  %1294 = vmatpush.msra.mxu0 0.0
  %1295 = vmatpush.msra.mxu0 0.0
  %1296 = vmatpush.msra.mxu0 %v1226
  %1297 = vmatpush.msra.mxu0 %v1225
  %1298 = vmatmul.f32.gmra.mxu0 %v1229
  %v1299 = vpop.f32.mrf.mxu0
  %v1300 = vadd.f32 0.0, %v1299
  %1301 = vmatmul.f32.gmra.mxu0 %v1232
  %v1302 = vpop.f32.mrf.mxu0
  %v1303 = vadd.f32 0.0, %v1302
  %1304 = vmatmul.f32.gmra.mxu0 %v1235
  %v1305 = vpop.f32.mrf.mxu0
  %v1306 = vadd.f32 0.0, %v1305
  %1307 = vmatmul.f32.gmra.mxu0 %v1238
  %v1308 = vpop.f32.mrf.mxu0
  %v1309 = vadd.f32 0.0, %v1308
  %1310 = vmatmul.f32.gmra.mxu0 %v1241
  %v1311 = vpop.f32.mrf.mxu0
  %v1312 = vadd.f32 0.0, %v1311
  %1313 = vmatmul.f32.gmra.mxu0 %v1244
  %v1314 = vpop.f32.mrf.mxu0
  %v1315 = vadd.f32 0.0, %v1314
  %1316 = vmatmul.f32.gmra.mxu0 %v1247
  %v1317 = vpop.f32.mrf.mxu0
  %v1318 = vadd.f32 0.0, %v1317
  %1319 = vmatmul.f32.gmra.mxu0 %v1250
  %v1320 = vpop.f32.mrf.mxu0
  %v1321 = vadd.f32 0.0, %v1320
  %1322 = vmatmul.f32.gmra.mxu0 %v1253
  %v1323 = vpop.f32.mrf.mxu0
  %v1324 = vadd.f32 0.0, %v1323
  %1325 = vmatmul.f32.gmra.mxu0 %v1256
  %v1326 = vpop.f32.mrf.mxu0
  %v1327 = vadd.f32 0.0, %v1326
  %1328 = vmatmul.f32.gmra.mxu0 %v1259
  %v1329 = vpop.f32.mrf.mxu0
  %v1330 = vadd.f32 0.0, %v1329
  %1331 = vmatmul.f32.gmra.mxu0 %v1262
  %v1332 = vpop.f32.mrf.mxu0
  %v1333 = vadd.f32 0.0, %v1332
  %1334 = vmatmul.f32.gmra.mxu0 %v1265
  %v1335 = vpop.f32.mrf.mxu0
  %v1336 = vadd.f32 0.0, %v1335
  %1337 = vmatmul.f32.gmra.mxu0 %v1268
  %v1338 = vpop.f32.mrf.mxu0
  %v1339 = vadd.f32 0.0, %v1338
  %1340 = vmatmul.f32.gmra.mxu0 %v1271
  %v1341 = vpop.f32.mrf.mxu0
  %v1342 = vadd.f32 0.0, %v1341
  %1343 = vmatmul.f32.gmra.mxu0 %v1274
  %v1344 = vpop.f32.mrf.mxu0
  %v1345 = vadd.f32 0.0, %v1344
  %1346 = vmatmul.f32.gmra.mxu0 %v1277
  %v1347 = vpop.f32.mrf.mxu0
  %v1348 = vadd.f32 0.0, %v1347
  %1349 = vmatmul.f32.gmra.mxu0 %v1280
  %v1350 = vpop.f32.mrf.mxu0
  %v1351 = vadd.f32 0.0, %v1350
  %1352 = vdwg.mxu0
  %v1354 = vsel %vm1227, %v1185, 0
  %v1357 = vsel %vm1227, %v1184, 0
  %v1360 = vsel %vm1227, %v1183, 0
  %v1363 = vsel %vm1227, %v1182, 0
  %v1366 = vsel %vm1227, %v1181, 0
  %v1369 = vsel %vm1227, %v1180, 0
  %v1372 = vsel %vm1227, %v1179, 0
  %v1375 = vsel %vm1227, %v1178, 0
  %v1378 = vsel %vm1227, %v1177, 0
  %v1381 = vsel %vm1227, %v1176, 0
  %v1384 = vsel %vm1227, %v1175, 0
  %v1387 = vsel %vm1227, %v1174, 0
  %v1390 = vsel %vm1227, %v1173, 0
  %v1393 = vsel %vm1227, %v1172, 0
  %v1396 = vsel %vm1227, %v1171, 0
  %v1399 = vsel %vm1227, %v1170, 0
  %v1402 = vsel %vm1227, %v1169, 0
  %v1405 = vsel %vm1227, %v1168, 0
  %1407 = vmatpush.msra.mxu0 0.0
  %1408 = vmatpush.msra.mxu0 0.0
  %1409 = vmatpush.msra.mxu0 0.0
  %1410 = vmatpush.msra.mxu0 0.0
  %1411 = vmatpush.msra.mxu0 0.0
  %1412 = vmatpush.msra.mxu0 0.0
  %1413 = vmatpush.msra.mxu0 0.0
  %1414 = vmatpush.msra.mxu0 0.0
  %1415 = vmatpush.msra.mxu0 0.0
  %1416 = vmatpush.msra.mxu0 0.0
  %1417 = vmatpush.msra.mxu0 0.0
  %1418 = vmatpush.msra.mxu0 0.0
  %1419 = vmatpush.msra.mxu0 0.0
  %1420 = vmatpush.msra.mxu0 0.0
  %1421 = vmatpush.msra.mxu0 %v1187
  %1422 = vmatpush.msra.mxu0 %v1186
  %1423 = vmatmul.f32.gmra.mxu0 %v1354
  %v1424 = vpop.f32.mrf.mxu0
  %v1425 = vadd.f32 %v1300, %v1424
  %1426 = vmatmul.f32.gmra.mxu0 %v1357
  %v1427 = vpop.f32.mrf.mxu0
  %v1428 = vadd.f32 %v1303, %v1427
  %1429 = vmatmul.f32.gmra.mxu0 %v1360
  %v1430 = vpop.f32.mrf.mxu0
  %v1431 = vadd.f32 %v1306, %v1430
  %1432 = vmatmul.f32.gmra.mxu0 %v1363
  %v1433 = vpop.f32.mrf.mxu0
  %v1434 = vadd.f32 %v1309, %v1433
  %1435 = vmatmul.f32.gmra.mxu0 %v1366
  %v1436 = vpop.f32.mrf.mxu0
  %v1437 = vadd.f32 %v1312, %v1436
  %1438 = vmatmul.f32.gmra.mxu0 %v1369
  %v1439 = vpop.f32.mrf.mxu0
  %v1440 = vadd.f32 %v1315, %v1439
  %1441 = vmatmul.f32.gmra.mxu0 %v1372
  %v1442 = vpop.f32.mrf.mxu0
  %v1443 = vadd.f32 %v1318, %v1442
  %1444 = vmatmul.f32.gmra.mxu0 %v1375
  %v1445 = vpop.f32.mrf.mxu0
  %v1446 = vadd.f32 %v1321, %v1445
  %1447 = vmatmul.f32.gmra.mxu0 %v1378
  %v1448 = vpop.f32.mrf.mxu0
  %v1449 = vadd.f32 %v1324, %v1448
  %1450 = vmatmul.f32.gmra.mxu0 %v1381
  %v1451 = vpop.f32.mrf.mxu0
  %v1452 = vadd.f32 %v1327, %v1451
  %1453 = vmatmul.f32.gmra.mxu0 %v1384
  %v1454 = vpop.f32.mrf.mxu0
  %v1455 = vadd.f32 %v1330, %v1454
  %1456 = vmatmul.f32.gmra.mxu0 %v1387
  %v1457 = vpop.f32.mrf.mxu0
  %v1458 = vadd.f32 %v1333, %v1457
  %1459 = vmatmul.f32.gmra.mxu0 %v1390
  %v1460 = vpop.f32.mrf.mxu0
  %v1461 = vadd.f32 %v1336, %v1460
  %1462 = vmatmul.f32.gmra.mxu0 %v1393
  %v1463 = vpop.f32.mrf.mxu0
  %v1464 = vadd.f32 %v1339, %v1463
  %1465 = vmatmul.f32.gmra.mxu0 %v1396
  %v1466 = vpop.f32.mrf.mxu0
  %v1467 = vadd.f32 %v1342, %v1466
  %1468 = vmatmul.f32.gmra.mxu0 %v1399
  %v1469 = vpop.f32.mrf.mxu0
  %v1470 = vadd.f32 %v1345, %v1469
  %1471 = vmatmul.f32.gmra.mxu0 %v1402
  %v1472 = vpop.f32.mrf.mxu0
  %v1473 = vadd.f32 %v1348, %v1472
  %1474 = vmatmul.f32.gmra.mxu0 %v1405
  %v1475 = vpop.f32.mrf.mxu0
  %v1476 = vadd.f32 %v1351, %v1475
  %1477 = vdwg.mxu0
  %s1478 = scalar_lea.vmem %s5, 32
  %v1479 = vld [vmem:[%s1478] sm:$0xff]
  %v1480 = vld [vmem:[%s1478 + $0x8] sm:$0xff]
  %v1482 = vsel %vm1227, %v1132, 0
  %v1485 = vsel %vm1227, %v1133, 0
  %v1488 = vsel %vm1227, %v1134, 0
  %v1491 = vsel %vm1227, %v1135, 0
  %v1494 = vsel %vm1227, %v1136, 0
  %v1497 = vsel %vm1227, %v1137, 0
  %v1500 = vsel %vm1227, %v1138, 0
  %v1503 = vsel %vm1227, %v1139, 0
  %v1506 = vsel %vm1227, %v1140, 0
  %v1509 = vsel %vm1227, %v1141, 0
  %v1512 = vsel %vm1227, %v1142, 0
  %v1515 = vsel %vm1227, %v1143, 0
  %v1518 = vsel %vm1227, %v1144, 0
  %v1521 = vsel %vm1227, %v1145, 0
  %v1524 = vsel %vm1227, %v1146, 0
  %v1527 = vsel %vm1227, %v1147, 0
  %v1530 = vsel %vm1227, %v1148, 0
  %v1533 = vsel %vm1227, %v1149, 0
  %1535 = vmatpush.msra.mxu0 0.0
  %1536 = vmatpush.msra.mxu0 0.0
  %1537 = vmatpush.msra.mxu0 0.0
  %1538 = vmatpush.msra.mxu0 0.0
  %1539 = vmatpush.msra.mxu0 0.0
  %1540 = vmatpush.msra.mxu0 0.0
  %1541 = vmatpush.msra.mxu0 0.0
  %1542 = vmatpush.msra.mxu0 0.0
  %1543 = vmatpush.msra.mxu0 0.0
  %1544 = vmatpush.msra.mxu0 0.0
  %1545 = vmatpush.msra.mxu0 0.0
  %1546 = vmatpush.msra.mxu0 0.0
  %1547 = vmatpush.msra.mxu0 0.0
  %1548 = vmatpush.msra.mxu0 0.0
  %1549 = vmatpush.msra.mxu0 %v1480
  %1550 = vmatpush.msra.mxu0 %v1479
  %1551 = vmatmul.f32.gmra.mxu0 %v1482
  %v1552 = vpop.f32.mrf.mxu0
  %v1553 = vadd.f32 0.0, %v1552
  %1554 = vmatmul.f32.gmra.mxu0 %v1485
  %v1555 = vpop.f32.mrf.mxu0
  %v1556 = vadd.f32 0.0, %v1555
  %1557 = vmatmul.f32.gmra.mxu0 %v1488
  %v1558 = vpop.f32.mrf.mxu0
  %v1559 = vadd.f32 0.0, %v1558
  %1560 = vmatmul.f32.gmra.mxu0 %v1491
  %v1561 = vpop.f32.mrf.mxu0
  %v1562 = vadd.f32 0.0, %v1561
  %1563 = vmatmul.f32.gmra.mxu0 %v1494
  %v1564 = vpop.f32.mrf.mxu0
  %v1565 = vadd.f32 0.0, %v1564
  %1566 = vmatmul.f32.gmra.mxu0 %v1497
  %v1567 = vpop.f32.mrf.mxu0
  %v1568 = vadd.f32 0.0, %v1567
  %1569 = vmatmul.f32.gmra.mxu0 %v1500
  %v1570 = vpop.f32.mrf.mxu0
  %v1571 = vadd.f32 0.0, %v1570
  %1572 = vmatmul.f32.gmra.mxu0 %v1503
  %v1573 = vpop.f32.mrf.mxu0
  %v1574 = vadd.f32 0.0, %v1573
  %1575 = vmatmul.f32.gmra.mxu0 %v1506
  %v1576 = vpop.f32.mrf.mxu0
  %v1577 = vadd.f32 0.0, %v1576
  %1578 = vmatmul.f32.gmra.mxu0 %v1509
  %v1579 = vpop.f32.mrf.mxu0
  %v1580 = vadd.f32 0.0, %v1579
  %1581 = vmatmul.f32.gmra.mxu0 %v1512
  %v1582 = vpop.f32.mrf.mxu0
  %v1583 = vadd.f32 0.0, %v1582
  %1584 = vmatmul.f32.gmra.mxu0 %v1515
  %v1585 = vpop.f32.mrf.mxu0
  %v1586 = vadd.f32 0.0, %v1585
  %1587 = vmatmul.f32.gmra.mxu0 %v1518
  %v1588 = vpop.f32.mrf.mxu0
  %v1589 = vadd.f32 0.0, %v1588
  %1590 = vmatmul.f32.gmra.mxu0 %v1521
  %v1591 = vpop.f32.mrf.mxu0
  %v1592 = vadd.f32 0.0, %v1591
  %1593 = vmatmul.f32.gmra.mxu0 %v1524
  %v1594 = vpop.f32.mrf.mxu0
  %v1595 = vadd.f32 0.0, %v1594
  %1596 = vmatmul.f32.gmra.mxu0 %v1527
  %v1597 = vpop.f32.mrf.mxu0
  %v1598 = vadd.f32 0.0, %v1597
  %1599 = vmatmul.f32.gmra.mxu0 %v1530
  %v1600 = vpop.f32.mrf.mxu0
  %v1601 = vadd.f32 0.0, %v1600
  %1602 = vmatmul.f32.gmra.mxu0 %v1533
  %v1603 = vpop.f32.mrf.mxu0
  %v1604 = vadd.f32 0.0, %v1603
  %1605 = vdwg.mxu0
  %v1606 = vadd.f32 %v1425, %v1553
  %v1607 = vadd.f32 %v1428, %v1556
  %v1608 = vadd.f32 %v1431, %v1559
  %v1609 = vadd.f32 %v1434, %v1562
  %v1610 = vadd.f32 %v1437, %v1565
  %v1611 = vadd.f32 %v1440, %v1568
  %v1612 = vadd.f32 %v1443, %v1571
  %v1613 = vadd.f32 %v1446, %v1574
  %v1614 = vadd.f32 %v1449, %v1577
  %v1615 = vadd.f32 %v1452, %v1580
  %v1616 = vadd.f32 %v1455, %v1583
  %v1617 = vadd.f32 %v1458, %v1586
  %v1618 = vadd.f32 %v1461, %v1589
  %v1619 = vadd.f32 %v1464, %v1592
  %v1620 = vadd.f32 %v1467, %v1595
  %v1621 = vadd.f32 %v1470, %v1598
  %v1622 = vadd.f32 %v1473, %v1601
  %v1623 = vadd.f32 %v1476, %v1604
  %v1624 = vrot.slane %v1132, 1
  %v1625 = vrot.slane %v1133, 1
  %v1626 = vrot.slane %v1134, 1
  %v1627 = vrot.slane %v1135, 1
  %v1628 = vrot.slane %v1136, 1
  %v1629 = vrot.slane %v1137, 1
  %v1630 = vrot.slane %v1138, 1
  %v1631 = vrot.slane %v1139, 1
  %v1632 = vrot.slane %v1140, 1
  %v1633 = vrot.slane %v1141, 1
  %v1634 = vrot.slane %v1142, 1
  %v1635 = vrot.slane %v1143, 1
  %v1636 = vrot.slane %v1144, 1
  %v1637 = vrot.slane %v1145, 1
  %v1638 = vrot.slane %v1146, 1
  %v1639 = vrot.slane %v1147, 1
  %v1640 = vrot.slane %v1148, 1
  %v1641 = vrot.slane %v1149, 1
  %v1642 = vsel %vm740, %v1640, %v1641
  %v1643 = vsel %vm740, %v1639, %v1640
  %v1644 = vsel %vm740, %v1638, %v1639
  %v1645 = vsel %vm740, %v1637, %v1638
  %v1646 = vsel %vm740, %v1636, %v1637
  %v1647 = vsel %vm740, %v1635, %v1636
  %v1648 = vsel %vm740, %v1634, %v1635
  %v1649 = vsel %vm740, %v1633, %v1634
  %v1650 = vsel %vm740, %v1632, %v1633
  %v1651 = vsel %vm740, %v1631, %v1632
  %v1652 = vsel %vm740, %v1630, %v1631
  %v1653 = vsel %vm740, %v1629, %v1630
  %v1654 = vsel %vm740, %v1628, %v1629
  %v1655 = vsel %vm740, %v1627, %v1628
  %v1656 = vsel %vm740, %v1626, %v1627
  %v1657 = vsel %vm740, %v1625, %v1626
  %v1658 = vsel %vm740, %v1624, %v1625
  %v1659 = vsel %vm740, %v1641, %v1624
  %s1660 = scalar_lea.vmem %s5, 48
  %v1661 = vld [vmem:[%s1660] sm:$0xff]
  %v1662 = vld [vmem:[%s1660 + $0x8] sm:$0xff]
  %v1664 = vsel %vm1227, %v1658, 0
  %v1667 = vsel %vm1227, %v1657, 0
  %v1670 = vsel %vm1227, %v1656, 0
  %v1673 = vsel %vm1227, %v1655, 0
  %v1676 = vsel %vm1227, %v1654, 0
  %v1679 = vsel %vm1227, %v1653, 0
  %v1682 = vsel %vm1227, %v1652, 0
  %v1685 = vsel %vm1227, %v1651, 0
  %v1688 = vsel %vm1227, %v1650, 0
  %v1691 = vsel %vm1227, %v1649, 0
  %v1694 = vsel %vm1227, %v1648, 0
  %v1697 = vsel %vm1227, %v1647, 0
  %v1700 = vsel %vm1227, %v1646, 0
  %v1703 = vsel %vm1227, %v1645, 0
  %v1706 = vsel %vm1227, %v1644, 0
  %v1709 = vsel %vm1227, %v1643, 0
  %v1712 = vsel %vm1227, %v1642, 0
  %v1715 = vsel %vm1227, %v1659, 0
  %1717 = vmatpush.msra.mxu0 0.0
  %1718 = vmatpush.msra.mxu0 0.0
  %1719 = vmatpush.msra.mxu0 0.0
  %1720 = vmatpush.msra.mxu0 0.0
  %1721 = vmatpush.msra.mxu0 0.0
  %1722 = vmatpush.msra.mxu0 0.0
  %1723 = vmatpush.msra.mxu0 0.0
  %1724 = vmatpush.msra.mxu0 0.0
  %1725 = vmatpush.msra.mxu0 0.0
  %1726 = vmatpush.msra.mxu0 0.0
  %1727 = vmatpush.msra.mxu0 0.0
  %1728 = vmatpush.msra.mxu0 0.0
  %1729 = vmatpush.msra.mxu0 0.0
  %1730 = vmatpush.msra.mxu0 0.0
  %1731 = vmatpush.msra.mxu0 %v1662
  %1732 = vmatpush.msra.mxu0 %v1661
  %1733 = vmatmul.f32.gmra.mxu0 %v1664
  %v1734 = vpop.f32.mrf.mxu0
  %v1735 = vadd.f32 0.0, %v1734
  %1736 = vmatmul.f32.gmra.mxu0 %v1667
  %v1737 = vpop.f32.mrf.mxu0
  %v1738 = vadd.f32 0.0, %v1737
  %1739 = vmatmul.f32.gmra.mxu0 %v1670
  %v1740 = vpop.f32.mrf.mxu0
  %v1741 = vadd.f32 0.0, %v1740
  %1742 = vmatmul.f32.gmra.mxu0 %v1673
  %v1743 = vpop.f32.mrf.mxu0
  %v1744 = vadd.f32 0.0, %v1743
  %1745 = vmatmul.f32.gmra.mxu0 %v1676
  %v1746 = vpop.f32.mrf.mxu0
  %v1747 = vadd.f32 0.0, %v1746
  %1748 = vmatmul.f32.gmra.mxu0 %v1679
  %v1749 = vpop.f32.mrf.mxu0
  %v1750 = vadd.f32 0.0, %v1749
  %1751 = vmatmul.f32.gmra.mxu0 %v1682
  %v1752 = vpop.f32.mrf.mxu0
  %v1753 = vadd.f32 0.0, %v1752
  %1754 = vmatmul.f32.gmra.mxu0 %v1685
  %v1755 = vpop.f32.mrf.mxu0
  %v1756 = vadd.f32 0.0, %v1755
  %1757 = vmatmul.f32.gmra.mxu0 %v1688
  %v1758 = vpop.f32.mrf.mxu0
  %v1759 = vadd.f32 0.0, %v1758
  %1760 = vmatmul.f32.gmra.mxu0 %v1691
  %v1761 = vpop.f32.mrf.mxu0
  %v1762 = vadd.f32 0.0, %v1761
  %1763 = vmatmul.f32.gmra.mxu0 %v1694
  %v1764 = vpop.f32.mrf.mxu0
  %v1765 = vadd.f32 0.0, %v1764
  %1766 = vmatmul.f32.gmra.mxu0 %v1697
  %v1767 = vpop.f32.mrf.mxu0
  %v1768 = vadd.f32 0.0, %v1767
  %1769 = vmatmul.f32.gmra.mxu0 %v1700
  %v1770 = vpop.f32.mrf.mxu0
  %v1771 = vadd.f32 0.0, %v1770
  %1772 = vmatmul.f32.gmra.mxu0 %v1703
  %v1773 = vpop.f32.mrf.mxu0
  %v1774 = vadd.f32 0.0, %v1773
  %1775 = vmatmul.f32.gmra.mxu0 %v1706
  %v1776 = vpop.f32.mrf.mxu0
  %v1777 = vadd.f32 0.0, %v1776
  %1778 = vmatmul.f32.gmra.mxu0 %v1709
  %v1779 = vpop.f32.mrf.mxu0
  %v1780 = vadd.f32 0.0, %v1779
  %1781 = vmatmul.f32.gmra.mxu0 %v1712
  %v1782 = vpop.f32.mrf.mxu0
  %v1783 = vadd.f32 0.0, %v1782
  %1784 = vmatmul.f32.gmra.mxu0 %v1715
  %v1785 = vpop.f32.mrf.mxu0
  %v1786 = vadd.f32 0.0, %v1785
  %1787 = vdwg.mxu0
  %v1788 = vadd.f32 %v1606, %v1735
  %v1789 = vadd.f32 %v1607, %v1738
  %v1790 = vadd.f32 %v1608, %v1741
  %v1791 = vadd.f32 %v1609, %v1744
  %v1792 = vadd.f32 %v1610, %v1747
  %v1793 = vadd.f32 %v1611, %v1750
  %v1794 = vadd.f32 %v1612, %v1753
  %v1795 = vadd.f32 %v1613, %v1756
  %v1796 = vadd.f32 %v1614, %v1759
  %v1797 = vadd.f32 %v1615, %v1762
  %v1798 = vadd.f32 %v1616, %v1765
  %v1799 = vadd.f32 %v1617, %v1768
  %v1800 = vadd.f32 %v1618, %v1771
  %v1801 = vadd.f32 %v1619, %v1774
  %v1802 = vadd.f32 %v1620, %v1777
  %v1803 = vadd.f32 %v1621, %v1780
  %v1804 = vadd.f32 %v1622, %v1783
  %v1805 = vadd.f32 %v1623, %v1786
  %v1806 = vrot.slane %v1132, 2
  %v1807 = vrot.slane %v1133, 2
  %v1808 = vrot.slane %v1134, 2
  %v1809 = vrot.slane %v1135, 2
  %v1810 = vrot.slane %v1136, 2
  %v1811 = vrot.slane %v1137, 2
  %v1812 = vrot.slane %v1138, 2
  %v1813 = vrot.slane %v1139, 2
  %v1814 = vrot.slane %v1140, 2
  %v1815 = vrot.slane %v1141, 2
  %v1816 = vrot.slane %v1142, 2
  %v1817 = vrot.slane %v1143, 2
  %v1818 = vrot.slane %v1144, 2
  %v1819 = vrot.slane %v1145, 2
  %v1820 = vrot.slane %v1146, 2
  %v1821 = vrot.slane %v1147, 2
  %v1822 = vrot.slane %v1148, 2
  %v1823 = vrot.slane %v1149, 2
  %v1824 = vsel %vm925, %v1822, %v1823
  %v1825 = vsel %vm925, %v1821, %v1822
  %v1826 = vsel %vm925, %v1820, %v1821
  %v1827 = vsel %vm925, %v1819, %v1820
  %v1828 = vsel %vm925, %v1818, %v1819
  %v1829 = vsel %vm925, %v1817, %v1818
  %v1830 = vsel %vm925, %v1816, %v1817
  %v1831 = vsel %vm925, %v1815, %v1816
  %v1832 = vsel %vm925, %v1814, %v1815
  %v1833 = vsel %vm925, %v1813, %v1814
  %v1834 = vsel %vm925, %v1812, %v1813
  %v1835 = vsel %vm925, %v1811, %v1812
  %v1836 = vsel %vm925, %v1810, %v1811
  %v1837 = vsel %vm925, %v1809, %v1810
  %v1838 = vsel %vm925, %v1808, %v1809
  %v1839 = vsel %vm925, %v1807, %v1808
  %v1840 = vsel %vm925, %v1806, %v1807
  %v1841 = vsel %vm925, %v1823, %v1806
  %s1842 = scalar_lea.vmem %s5, 64
  %v1843 = vld [vmem:[%s1842] sm:$0xff]
  %v1844 = vld [vmem:[%s1842 + $0x8] sm:$0xff]
  %v1846 = vsel %vm1227, %v1840, 0
  %v1849 = vsel %vm1227, %v1839, 0
  %v1852 = vsel %vm1227, %v1838, 0
  %v1855 = vsel %vm1227, %v1837, 0
  %v1858 = vsel %vm1227, %v1836, 0
  %v1861 = vsel %vm1227, %v1835, 0
  %v1864 = vsel %vm1227, %v1834, 0
  %v1867 = vsel %vm1227, %v1833, 0
  %v1870 = vsel %vm1227, %v1832, 0
  %v1873 = vsel %vm1227, %v1831, 0
  %v1876 = vsel %vm1227, %v1830, 0
  %v1879 = vsel %vm1227, %v1829, 0
  %v1882 = vsel %vm1227, %v1828, 0
  %v1885 = vsel %vm1227, %v1827, 0
  %v1888 = vsel %vm1227, %v1826, 0
  %v1891 = vsel %vm1227, %v1825, 0
  %v1894 = vsel %vm1227, %v1824, 0
  %v1897 = vsel %vm1227, %v1841, 0
  %1899 = vmatpush.msra.mxu0 0.0
  %1900 = vmatpush.msra.mxu0 0.0
  %1901 = vmatpush.msra.mxu0 0.0
  %1902 = vmatpush.msra.mxu0 0.0
  %1903 = vmatpush.msra.mxu0 0.0
  %1904 = vmatpush.msra.mxu0 0.0
  %1905 = vmatpush.msra.mxu0 0.0
  %1906 = vmatpush.msra.mxu0 0.0
  %1907 = vmatpush.msra.mxu0 0.0
  %1908 = vmatpush.msra.mxu0 0.0
  %1909 = vmatpush.msra.mxu0 0.0
  %1910 = vmatpush.msra.mxu0 0.0
  %1911 = vmatpush.msra.mxu0 0.0
  %1912 = vmatpush.msra.mxu0 0.0
  %1913 = vmatpush.msra.mxu0 %v1844
  %1914 = vmatpush.msra.mxu0 %v1843
  %1915 = vmatmul.f32.gmra.mxu0 %v1846
  %v1916 = vpop.f32.mrf.mxu0
  %v1917 = vadd.f32 0.0, %v1916
  %1918 = vmatmul.f32.gmra.mxu0 %v1849
  %v1919 = vpop.f32.mrf.mxu0
  %v1920 = vadd.f32 0.0, %v1919
  %1921 = vmatmul.f32.gmra.mxu0 %v1852
  %v1922 = vpop.f32.mrf.mxu0
  %v1923 = vadd.f32 0.0, %v1922
  %1924 = vmatmul.f32.gmra.mxu0 %v1855
  %v1925 = vpop.f32.mrf.mxu0
  %v1926 = vadd.f32 0.0, %v1925
  %1927 = vmatmul.f32.gmra.mxu0 %v1858
  %v1928 = vpop.f32.mrf.mxu0
  %v1929 = vadd.f32 0.0, %v1928
  %1930 = vmatmul.f32.gmra.mxu0 %v1861
  %v1931 = vpop.f32.mrf.mxu0
  %v1932 = vadd.f32 0.0, %v1931
  %1933 = vmatmul.f32.gmra.mxu0 %v1864
  %v1934 = vpop.f32.mrf.mxu0
  %v1935 = vadd.f32 0.0, %v1934
  %1936 = vmatmul.f32.gmra.mxu0 %v1867
  %v1937 = vpop.f32.mrf.mxu0
  %v1938 = vadd.f32 0.0, %v1937
  %1939 = vmatmul.f32.gmra.mxu0 %v1870
  %v1940 = vpop.f32.mrf.mxu0
  %v1941 = vadd.f32 0.0, %v1940
  %1942 = vmatmul.f32.gmra.mxu0 %v1873
  %v1943 = vpop.f32.mrf.mxu0
  %v1944 = vadd.f32 0.0, %v1943
  %1945 = vmatmul.f32.gmra.mxu0 %v1876
  %v1946 = vpop.f32.mrf.mxu0
  %v1947 = vadd.f32 0.0, %v1946
  %1948 = vmatmul.f32.gmra.mxu0 %v1879
  %v1949 = vpop.f32.mrf.mxu0
  %v1950 = vadd.f32 0.0, %v1949
  %1951 = vmatmul.f32.gmra.mxu0 %v1882
  %v1952 = vpop.f32.mrf.mxu0
  %v1953 = vadd.f32 0.0, %v1952
  %1954 = vmatmul.f32.gmra.mxu0 %v1885
  %v1955 = vpop.f32.mrf.mxu0
  %v1956 = vadd.f32 0.0, %v1955
  %1957 = vmatmul.f32.gmra.mxu0 %v1888
  %v1958 = vpop.f32.mrf.mxu0
  %v1959 = vadd.f32 0.0, %v1958
  %1960 = vmatmul.f32.gmra.mxu0 %v1891
  %v1961 = vpop.f32.mrf.mxu0
  %v1962 = vadd.f32 0.0, %v1961
  %1963 = vmatmul.f32.gmra.mxu0 %v1894
  %v1964 = vpop.f32.mrf.mxu0
  %v1965 = vadd.f32 0.0, %v1964
  %1966 = vmatmul.f32.gmra.mxu0 %v1897
  %v1967 = vpop.f32.mrf.mxu0
  %v1968 = vadd.f32 0.0, %v1967
  %1969 = vdwg.mxu0
  %v1970 = vadd.f32 %v1788, %v1917
  %v1971 = vadd.f32 %v1789, %v1920
  %v1972 = vadd.f32 %v1790, %v1923
  %v1973 = vadd.f32 %v1791, %v1926
  %v1974 = vadd.f32 %v1792, %v1929
  %v1975 = vadd.f32 %v1793, %v1932
  %v1976 = vadd.f32 %v1794, %v1935
  %v1977 = vadd.f32 %v1795, %v1938
  %v1978 = vadd.f32 %v1796, %v1941
  %v1979 = vadd.f32 %v1797, %v1944
  %v1980 = vadd.f32 %v1798, %v1947
  %v1981 = vadd.f32 %v1799, %v1950
  %v1982 = vadd.f32 %v1800, %v1953
  %v1983 = vadd.f32 %v1801, %v1956
  %v1984 = vadd.f32 %v1802, %v1959
  %v1985 = vadd.f32 %v1803, %v1962
  %v1986 = vadd.f32 %v1804, %v1965
  %v1987 = vadd.f32 %v1805, %v1968
  %v1988 = vld [vmem:[%s6] sm:$0x1]
  %v1990 = vperm.slane %v1988, 0
  %v1992 = vadd.f32 %v1970, %v1990
  %v1993 = vadd.f32 %v1971, %v1990
  %v1994 = vadd.f32 %v1972, %v1990
  %v1995 = vadd.f32 %v1973, %v1990
  %v1996 = vadd.f32 %v1974, %v1990
  %v1997 = vadd.f32 %v1975, %v1990
  %v1998 = vadd.f32 %v1976, %v1990
  %v1999 = vadd.f32 %v1977, %v1990
  %v2000 = vadd.f32 %v1978, %v1990
  %v2001 = vadd.f32 %v1979, %v1990
  %v2002 = vadd.f32 %v1980, %v1990
  %v2003 = vadd.f32 %v1981, %v1990
  %v2004 = vadd.f32 %v1982, %v1990
  %v2005 = vadd.f32 %v1983, %v1990
  %v2006 = vadd.f32 %v1984, %v1990
  %v2007 = vadd.f32 %v1985, %v1990
  %v2008 = vadd.f32 %v1986, %v1990
  %v2009 = vadd.f32 %v1987, %v1990
  %v2010 = vmax.f32 %v1992, 0.0
  %v2011 = vmax.f32 %v1993, 0.0
  %v2012 = vmax.f32 %v1994, 0.0
  %v2013 = vmax.f32 %v1995, 0.0
  %v2014 = vmax.f32 %v1996, 0.0
  %v2015 = vmax.f32 %v1997, 0.0
  %v2016 = vmax.f32 %v1998, 0.0
  %v2017 = vmax.f32 %v1999, 0.0
  %v2018 = vmax.f32 %v2000, 0.0
  %v2019 = vmax.f32 %v2001, 0.0
  %v2020 = vmax.f32 %v2002, 0.0
  %v2021 = vmax.f32 %v2003, 0.0
  %v2022 = vmax.f32 %v2004, 0.0
  %v2023 = vmax.f32 %v2005, 0.0
  %v2024 = vmax.f32 %v2006, 0.0
  %v2025 = vmax.f32 %v2007, 0.0
  %v2026 = vmax.f32 %v2008, 0.0
  %v2027 = vmax.f32 %v2009, 0.0
  %v2028 = vmul.f32 %v2010, %v230
  %v2029 = vmul.f32 %v2011, %v231
  %v2030 = vmul.f32 %v2012, %v232
  %v2031 = vmul.f32 %v2013, %v233
  %v2032 = vmul.f32 %v2014, %v234
  %v2033 = vmul.f32 %v2015, %v235
  %v2034 = vmul.f32 %v2016, %v236
  %v2035 = vmul.f32 %v2017, %v237
  %v2036 = vmul.f32 %v2018, %v238
  %v2037 = vmul.f32 %v2019, %v230
  %v2038 = vmul.f32 %v2020, %v231
  %v2039 = vmul.f32 %v2021, %v232
  %v2040 = vmul.f32 %v2022, %v233
  %v2041 = vmul.f32 %v2023, %v234
  %v2042 = vmul.f32 %v2024, %v235
  %v2043 = vmul.f32 %v2025, %v236
  %v2044 = vmul.f32 %v2026, %v237
  %v2045 = vmul.f32 %v2027, %v238
  %v2046 = vrot.slane %v2028, 6
  %v2047 = vrot.slane %v2029, 6
  %v2048 = vrot.slane %v2030, 6
  %v2049 = vrot.slane %v2031, 6
  %v2050 = vrot.slane %v2032, 6
  %v2051 = vrot.slane %v2033, 6
  %v2052 = vrot.slane %v2034, 6
  %v2053 = vrot.slane %v2035, 6
  %v2054 = vrot.slane %v2036, 6
  %v2055 = vrot.slane %v2037, 6
  %v2056 = vrot.slane %v2038, 6
  %v2057 = vrot.slane %v2039, 6
  %v2058 = vrot.slane %v2040, 6
  %v2059 = vrot.slane %v2041, 6
  %v2060 = vrot.slane %v2042, 6
  %v2061 = vrot.slane %v2043, 6
  %v2062 = vrot.slane %v2044, 6
  %v2063 = vrot.slane %v2045, 6
  %v2064 = vsel %vm257, %v2062, %v2063
  %v2065 = vsel %vm257, %v2061, %v2062
  %v2066 = vsel %vm257, %v2060, %v2061
  %v2067 = vsel %vm257, %v2059, %v2060
  %v2068 = vsel %vm257, %v2058, %v2059
  %v2069 = vsel %vm257, %v2057, %v2058
  %v2070 = vsel %vm257, %v2056, %v2057
  %v2071 = vsel %vm257, %v2055, %v2056
  %v2072 = vsel %vm257, %v2054, %v2055
  %v2073 = vsel %vm257, %v2053, %v2054
  %v2074 = vsel %vm257, %v2052, %v2053
  %v2075 = vsel %vm257, %v2051, %v2052
  %v2076 = vsel %vm257, %v2050, %v2051
  %v2077 = vsel %vm257, %v2049, %v2050
  %v2078 = vsel %vm257, %v2048, %v2049
  %v2079 = vsel %vm257, %v2047, %v2048
  %v2080 = vsel %vm257, %v2046, %v2047
  %v2081 = vsel %vm257, %v2063, %v2046
  %v2082 = vld [vmem:[%s7] sm:$0xff]
  %v2083 = vld [vmem:[%s7 + $0x8] sm:$0xff]
  %v2084 = vld [vmem:[%s7 + $0x10] sm:$0xff]
  %v2085 = vld [vmem:[%s7 + $0x18] sm:$0xff]
  %v2086 = vrot.slane %v2028, 7
  %v2087 = vrot.slane %v2029, 7
  %v2088 = vrot.slane %v2030, 7
  %v2089 = vrot.slane %v2031, 7
  %v2090 = vrot.slane %v2032, 7
  %v2091 = vrot.slane %v2033, 7
  %v2092 = vrot.slane %v2034, 7
  %v2093 = vrot.slane %v2035, 7
  %v2094 = vrot.slane %v2036, 7
  %v2095 = vrot.slane %v2037, 7
  %v2096 = vrot.slane %v2038, 7
  %v2097 = vrot.slane %v2039, 7
  %v2098 = vrot.slane %v2040, 7
  %v2099 = vrot.slane %v2041, 7
  %v2100 = vrot.slane %v2042, 7
  %v2101 = vrot.slane %v2043, 7
  %v2102 = vrot.slane %v2044, 7
  %v2103 = vrot.slane %v2045, 7
  %v2104 = vsel %vm295, %v2102, %v2103
  %v2105 = vsel %vm295, %v2101, %v2102
  %v2106 = vsel %vm295, %v2100, %v2101
  %v2107 = vsel %vm295, %v2099, %v2100
  %v2108 = vsel %vm295, %v2098, %v2099
  %v2109 = vsel %vm295, %v2097, %v2098
  %v2110 = vsel %vm295, %v2096, %v2097
  %v2111 = vsel %vm295, %v2095, %v2096
  %v2112 = vsel %vm295, %v2094, %v2095
  %v2113 = vsel %vm295, %v2093, %v2094
  %v2114 = vsel %vm295, %v2092, %v2093
  %v2115 = vsel %vm295, %v2091, %v2092
  %v2116 = vsel %vm295, %v2090, %v2091
  %v2117 = vsel %vm295, %v2089, %v2090
  %v2118 = vsel %vm295, %v2088, %v2089
  %v2119 = vsel %vm295, %v2087, %v2088
  %v2120 = vsel %vm295, %v2086, %v2087
  %v2121 = vsel %vm295, %v2103, %v2086
  %s2122 = scalar_lea.vmem %s7, 32
  %v2123 = vld [vmem:[%s2122] sm:$0xff]
  %v2124 = vld [vmem:[%s2122 + $0x8] sm:$0xff]
  %v2125 = vld [vmem:[%s2122 + $0x10] sm:$0xff]
  %v2126 = vld [vmem:[%s2122 + $0x18] sm:$0xff]
  %vm2127 = vcmask 261120
  %v2129 = vsel %vm2127, %v2121, 0
  %v2132 = vsel %vm2127, %v2120, 0
  %v2135 = vsel %vm2127, %v2119, 0
  %v2138 = vsel %vm2127, %v2118, 0
  %v2141 = vsel %vm2127, %v2117, 0
  %v2144 = vsel %vm2127, %v2116, 0
  %v2147 = vsel %vm2127, %v2115, 0
  %v2150 = vsel %vm2127, %v2114, 0
  %v2153 = vsel %vm2127, %v2113, 0
  %v2156 = vsel %vm2127, %v2112, 0
  %v2159 = vsel %vm2127, %v2111, 0
  %v2162 = vsel %vm2127, %v2110, 0
  %v2165 = vsel %vm2127, %v2109, 0
  %v2168 = vsel %vm2127, %v2108, 0
  %v2171 = vsel %vm2127, %v2107, 0
  %v2174 = vsel %vm2127, %v2106, 0
  %v2177 = vsel %vm2127, %v2105, 0
  %v2180 = vsel %vm2127, %v2104, 0
  %2182 = vmatpush.msra.mxu0 0.0
  %2183 = vmatpush.msra.mxu0 0.0
  %2184 = vmatpush.msra.mxu0 0.0
  %2185 = vmatpush.msra.mxu0 0.0
  %2186 = vmatpush.msra.mxu0 0.0
  %2187 = vmatpush.msra.mxu0 0.0
  %2188 = vmatpush.msra.mxu0 0.0
  %2189 = vmatpush.msra.mxu0 0.0
  %2190 = vmatpush.msra.mxu0 0.0
  %2191 = vmatpush.msra.mxu0 0.0
  %2192 = vmatpush.msra.mxu0 0.0
  %2193 = vmatpush.msra.mxu0 0.0
  %2194 = vmatpush.msra.mxu0 %v2126
  %2195 = vmatpush.msra.mxu0 %v2125
  %2196 = vmatpush.msra.mxu0 %v2124
  %2197 = vmatpush.msra.mxu0 %v2123
  %2198 = vmatmul.f32.gmra.mxu0 %v2129
  %v2199 = vpop.f32.mrf.mxu0
  %v2200 = vadd.f32 0.0, %v2199
  %2201 = vmatmul.f32.gmra.mxu0 %v2132
  %v2202 = vpop.f32.mrf.mxu0
  %v2203 = vadd.f32 0.0, %v2202
  %2204 = vmatmul.f32.gmra.mxu0 %v2135
  %v2205 = vpop.f32.mrf.mxu0
  %v2206 = vadd.f32 0.0, %v2205
  %2207 = vmatmul.f32.gmra.mxu0 %v2138
  %v2208 = vpop.f32.mrf.mxu0
  %v2209 = vadd.f32 0.0, %v2208
  %2210 = vmatmul.f32.gmra.mxu0 %v2141
  %v2211 = vpop.f32.mrf.mxu0
  %v2212 = vadd.f32 0.0, %v2211
  %2213 = vmatmul.f32.gmra.mxu0 %v2144
  %v2214 = vpop.f32.mrf.mxu0
  %v2215 = vadd.f32 0.0, %v2214
  %2216 = vmatmul.f32.gmra.mxu0 %v2147
  %v2217 = vpop.f32.mrf.mxu0
  %v2218 = vadd.f32 0.0, %v2217
  %2219 = vmatmul.f32.gmra.mxu0 %v2150
  %v2220 = vpop.f32.mrf.mxu0
  %v2221 = vadd.f32 0.0, %v2220
  %2222 = vmatmul.f32.gmra.mxu0 %v2153
  %v2223 = vpop.f32.mrf.mxu0
  %v2224 = vadd.f32 0.0, %v2223
  %2225 = vmatmul.f32.gmra.mxu0 %v2156
  %v2226 = vpop.f32.mrf.mxu0
  %v2227 = vadd.f32 0.0, %v2226
  %2228 = vmatmul.f32.gmra.mxu0 %v2159
  %v2229 = vpop.f32.mrf.mxu0
  %v2230 = vadd.f32 0.0, %v2229
  %2231 = vmatmul.f32.gmra.mxu0 %v2162
  %v2232 = vpop.f32.mrf.mxu0
  %v2233 = vadd.f32 0.0, %v2232
  %2234 = vmatmul.f32.gmra.mxu0 %v2165
  %v2235 = vpop.f32.mrf.mxu0
  %v2236 = vadd.f32 0.0, %v2235
  %2237 = vmatmul.f32.gmra.mxu0 %v2168
  %v2238 = vpop.f32.mrf.mxu0
  %v2239 = vadd.f32 0.0, %v2238
  %2240 = vmatmul.f32.gmra.mxu0 %v2171
  %v2241 = vpop.f32.mrf.mxu0
  %v2242 = vadd.f32 0.0, %v2241
  %2243 = vmatmul.f32.gmra.mxu0 %v2174
  %v2244 = vpop.f32.mrf.mxu0
  %v2245 = vadd.f32 0.0, %v2244
  %2246 = vmatmul.f32.gmra.mxu0 %v2177
  %v2247 = vpop.f32.mrf.mxu0
  %v2248 = vadd.f32 0.0, %v2247
  %2249 = vmatmul.f32.gmra.mxu0 %v2180
  %v2250 = vpop.f32.mrf.mxu0
  %v2251 = vadd.f32 0.0, %v2250
  %2252 = vdwg.mxu0
  %v2254 = vsel %vm2127, %v2081, 0
  %v2257 = vsel %vm2127, %v2080, 0
  %v2260 = vsel %vm2127, %v2079, 0
  %v2263 = vsel %vm2127, %v2078, 0
  %v2266 = vsel %vm2127, %v2077, 0
  %v2269 = vsel %vm2127, %v2076, 0
  %v2272 = vsel %vm2127, %v2075, 0
  %v2275 = vsel %vm2127, %v2074, 0
  %v2278 = vsel %vm2127, %v2073, 0
  %v2281 = vsel %vm2127, %v2072, 0
  %v2284 = vsel %vm2127, %v2071, 0
  %v2287 = vsel %vm2127, %v2070, 0
  %v2290 = vsel %vm2127, %v2069, 0
  %v2293 = vsel %vm2127, %v2068, 0
  %v2296 = vsel %vm2127, %v2067, 0
  %v2299 = vsel %vm2127, %v2066, 0
  %v2302 = vsel %vm2127, %v2065, 0
  %v2305 = vsel %vm2127, %v2064, 0
  %2307 = vmatpush.msra.mxu0 0.0
  %2308 = vmatpush.msra.mxu0 0.0
  %2309 = vmatpush.msra.mxu0 0.0
  %2310 = vmatpush.msra.mxu0 0.0
  %2311 = vmatpush.msra.mxu0 0.0
  %2312 = vmatpush.msra.mxu0 0.0
  %2313 = vmatpush.msra.mxu0 0.0
  %2314 = vmatpush.msra.mxu0 0.0
  %2315 = vmatpush.msra.mxu0 0.0
  %2316 = vmatpush.msra.mxu0 0.0
  %2317 = vmatpush.msra.mxu0 0.0
  %2318 = vmatpush.msra.mxu0 0.0
  %2319 = vmatpush.msra.mxu0 %v2085
  %2320 = vmatpush.msra.mxu0 %v2084
  %2321 = vmatpush.msra.mxu0 %v2083
  %2322 = vmatpush.msra.mxu0 %v2082
  %2323 = vmatmul.f32.gmra.mxu0 %v2254
  %v2324 = vpop.f32.mrf.mxu0
  %v2325 = vadd.f32 %v2200, %v2324
  %2326 = vmatmul.f32.gmra.mxu0 %v2257
  %v2327 = vpop.f32.mrf.mxu0
  %v2328 = vadd.f32 %v2203, %v2327
  %2329 = vmatmul.f32.gmra.mxu0 %v2260
  %v2330 = vpop.f32.mrf.mxu0
  %v2331 = vadd.f32 %v2206, %v2330
  %2332 = vmatmul.f32.gmra.mxu0 %v2263
  %v2333 = vpop.f32.mrf.mxu0
  %v2334 = vadd.f32 %v2209, %v2333
  %2335 = vmatmul.f32.gmra.mxu0 %v2266
  %v2336 = vpop.f32.mrf.mxu0
  %v2337 = vadd.f32 %v2212, %v2336
  %2338 = vmatmul.f32.gmra.mxu0 %v2269
  %v2339 = vpop.f32.mrf.mxu0
  %v2340 = vadd.f32 %v2215, %v2339
  %2341 = vmatmul.f32.gmra.mxu0 %v2272
  %v2342 = vpop.f32.mrf.mxu0
  %v2343 = vadd.f32 %v2218, %v2342
  %2344 = vmatmul.f32.gmra.mxu0 %v2275
  %v2345 = vpop.f32.mrf.mxu0
  %v2346 = vadd.f32 %v2221, %v2345
  %2347 = vmatmul.f32.gmra.mxu0 %v2278
  %v2348 = vpop.f32.mrf.mxu0
  %v2349 = vadd.f32 %v2224, %v2348
  %2350 = vmatmul.f32.gmra.mxu0 %v2281
  %v2351 = vpop.f32.mrf.mxu0
  %v2352 = vadd.f32 %v2227, %v2351
  %2353 = vmatmul.f32.gmra.mxu0 %v2284
  %v2354 = vpop.f32.mrf.mxu0
  %v2355 = vadd.f32 %v2230, %v2354
  %2356 = vmatmul.f32.gmra.mxu0 %v2287
  %v2357 = vpop.f32.mrf.mxu0
  %v2358 = vadd.f32 %v2233, %v2357
  %2359 = vmatmul.f32.gmra.mxu0 %v2290
  %v2360 = vpop.f32.mrf.mxu0
  %v2361 = vadd.f32 %v2236, %v2360
  %2362 = vmatmul.f32.gmra.mxu0 %v2293
  %v2363 = vpop.f32.mrf.mxu0
  %v2364 = vadd.f32 %v2239, %v2363
  %2365 = vmatmul.f32.gmra.mxu0 %v2296
  %v2366 = vpop.f32.mrf.mxu0
  %v2367 = vadd.f32 %v2242, %v2366
  %2368 = vmatmul.f32.gmra.mxu0 %v2299
  %v2369 = vpop.f32.mrf.mxu0
  %v2370 = vadd.f32 %v2245, %v2369
  %2371 = vmatmul.f32.gmra.mxu0 %v2302
  %v2372 = vpop.f32.mrf.mxu0
  %v2373 = vadd.f32 %v2248, %v2372
  %2374 = vmatmul.f32.gmra.mxu0 %v2305
  %v2375 = vpop.f32.mrf.mxu0
  %v2376 = vadd.f32 %v2251, %v2375
  %2377 = vdwg.mxu0
  %s2378 = scalar_lea.vmem %s7, 64
  %v2379 = vld [vmem:[%s2378] sm:$0xff]
  %v2380 = vld [vmem:[%s2378 + $0x8] sm:$0xff]
  %v2381 = vld [vmem:[%s2378 + $0x10] sm:$0xff]
  %v2382 = vld [vmem:[%s2378 + $0x18] sm:$0xff]
  %v2384 = vsel %vm2127, %v2028, 0
  %v2387 = vsel %vm2127, %v2029, 0
  %v2390 = vsel %vm2127, %v2030, 0
  %v2393 = vsel %vm2127, %v2031, 0
  %v2396 = vsel %vm2127, %v2032, 0
  %v2399 = vsel %vm2127, %v2033, 0
  %v2402 = vsel %vm2127, %v2034, 0
  %v2405 = vsel %vm2127, %v2035, 0
  %v2408 = vsel %vm2127, %v2036, 0
  %v2411 = vsel %vm2127, %v2037, 0
  %v2414 = vsel %vm2127, %v2038, 0
  %v2417 = vsel %vm2127, %v2039, 0
  %v2420 = vsel %vm2127, %v2040, 0
  %v2423 = vsel %vm2127, %v2041, 0
  %v2426 = vsel %vm2127, %v2042, 0
  %v2429 = vsel %vm2127, %v2043, 0
  %v2432 = vsel %vm2127, %v2044, 0
  %v2435 = vsel %vm2127, %v2045, 0
  %2437 = vmatpush.msra.mxu0 0.0
  %2438 = vmatpush.msra.mxu0 0.0
  %2439 = vmatpush.msra.mxu0 0.0
  %2440 = vmatpush.msra.mxu0 0.0
  %2441 = vmatpush.msra.mxu0 0.0
  %2442 = vmatpush.msra.mxu0 0.0
  %2443 = vmatpush.msra.mxu0 0.0
  %2444 = vmatpush.msra.mxu0 0.0
  %2445 = vmatpush.msra.mxu0 0.0
  %2446 = vmatpush.msra.mxu0 0.0
  %2447 = vmatpush.msra.mxu0 0.0
  %2448 = vmatpush.msra.mxu0 0.0
  %2449 = vmatpush.msra.mxu0 %v2382
  %2450 = vmatpush.msra.mxu0 %v2381
  %2451 = vmatpush.msra.mxu0 %v2380
  %2452 = vmatpush.msra.mxu0 %v2379
  %2453 = vmatmul.f32.gmra.mxu0 %v2384
  %v2454 = vpop.f32.mrf.mxu0
  %v2455 = vadd.f32 0.0, %v2454
  %2456 = vmatmul.f32.gmra.mxu0 %v2387
  %v2457 = vpop.f32.mrf.mxu0
  %v2458 = vadd.f32 0.0, %v2457
  %2459 = vmatmul.f32.gmra.mxu0 %v2390
  %v2460 = vpop.f32.mrf.mxu0
  %v2461 = vadd.f32 0.0, %v2460
  %2462 = vmatmul.f32.gmra.mxu0 %v2393
  %v2463 = vpop.f32.mrf.mxu0
  %v2464 = vadd.f32 0.0, %v2463
  %2465 = vmatmul.f32.gmra.mxu0 %v2396
  %v2466 = vpop.f32.mrf.mxu0
  %v2467 = vadd.f32 0.0, %v2466
  %2468 = vmatmul.f32.gmra.mxu0 %v2399
  %v2469 = vpop.f32.mrf.mxu0
  %v2470 = vadd.f32 0.0, %v2469
  %2471 = vmatmul.f32.gmra.mxu0 %v2402
  %v2472 = vpop.f32.mrf.mxu0
  %v2473 = vadd.f32 0.0, %v2472
  %2474 = vmatmul.f32.gmra.mxu0 %v2405
  %v2475 = vpop.f32.mrf.mxu0
  %v2476 = vadd.f32 0.0, %v2475
  %2477 = vmatmul.f32.gmra.mxu0 %v2408
  %v2478 = vpop.f32.mrf.mxu0
  %v2479 = vadd.f32 0.0, %v2478
  %2480 = vmatmul.f32.gmra.mxu0 %v2411
  %v2481 = vpop.f32.mrf.mxu0
  %v2482 = vadd.f32 0.0, %v2481
  %2483 = vmatmul.f32.gmra.mxu0 %v2414
  %v2484 = vpop.f32.mrf.mxu0
  %v2485 = vadd.f32 0.0, %v2484
  %2486 = vmatmul.f32.gmra.mxu0 %v2417
  %v2487 = vpop.f32.mrf.mxu0
  %v2488 = vadd.f32 0.0, %v2487
  %2489 = vmatmul.f32.gmra.mxu0 %v2420
  %v2490 = vpop.f32.mrf.mxu0
  %v2491 = vadd.f32 0.0, %v2490
  %2492 = vmatmul.f32.gmra.mxu0 %v2423
  %v2493 = vpop.f32.mrf.mxu0
  %v2494 = vadd.f32 0.0, %v2493
  %2495 = vmatmul.f32.gmra.mxu0 %v2426
  %v2496 = vpop.f32.mrf.mxu0
  %v2497 = vadd.f32 0.0, %v2496
  %2498 = vmatmul.f32.gmra.mxu0 %v2429
  %v2499 = vpop.f32.mrf.mxu0
  %v2500 = vadd.f32 0.0, %v2499
  %2501 = vmatmul.f32.gmra.mxu0 %v2432
  %v2502 = vpop.f32.mrf.mxu0
  %v2503 = vadd.f32 0.0, %v2502
  %2504 = vmatmul.f32.gmra.mxu0 %v2435
  %v2505 = vpop.f32.mrf.mxu0
  %v2506 = vadd.f32 0.0, %v2505
  %2507 = vdwg.mxu0
  %v2508 = vadd.f32 %v2325, %v2455
  %v2509 = vadd.f32 %v2328, %v2458
  %v2510 = vadd.f32 %v2331, %v2461
  %v2511 = vadd.f32 %v2334, %v2464
  %v2512 = vadd.f32 %v2337, %v2467
  %v2513 = vadd.f32 %v2340, %v2470
  %v2514 = vadd.f32 %v2343, %v2473
  %v2515 = vadd.f32 %v2346, %v2476
  %v2516 = vadd.f32 %v2349, %v2479
  %v2517 = vadd.f32 %v2352, %v2482
  %v2518 = vadd.f32 %v2355, %v2485
  %v2519 = vadd.f32 %v2358, %v2488
  %v2520 = vadd.f32 %v2361, %v2491
  %v2521 = vadd.f32 %v2364, %v2494
  %v2522 = vadd.f32 %v2367, %v2497
  %v2523 = vadd.f32 %v2370, %v2500
  %v2524 = vadd.f32 %v2373, %v2503
  %v2525 = vadd.f32 %v2376, %v2506
  %v2526 = vrot.slane %v2028, 1
  %v2527 = vrot.slane %v2029, 1
  %v2528 = vrot.slane %v2030, 1
  %v2529 = vrot.slane %v2031, 1
  %v2530 = vrot.slane %v2032, 1
  %v2531 = vrot.slane %v2033, 1
  %v2532 = vrot.slane %v2034, 1
  %v2533 = vrot.slane %v2035, 1
  %v2534 = vrot.slane %v2036, 1
  %v2535 = vrot.slane %v2037, 1
  %v2536 = vrot.slane %v2038, 1
  %v2537 = vrot.slane %v2039, 1
  %v2538 = vrot.slane %v2040, 1
  %v2539 = vrot.slane %v2041, 1
  %v2540 = vrot.slane %v2042, 1
  %v2541 = vrot.slane %v2043, 1
  %v2542 = vrot.slane %v2044, 1
  %v2543 = vrot.slane %v2045, 1
  %v2544 = vsel %vm740, %v2542, %v2543
  %v2545 = vsel %vm740, %v2541, %v2542
  %v2546 = vsel %vm740, %v2540, %v2541
  %v2547 = vsel %vm740, %v2539, %v2540
  %v2548 = vsel %vm740, %v2538, %v2539
  %v2549 = vsel %vm740, %v2537, %v2538
  %v2550 = vsel %vm740, %v2536, %v2537
  %v2551 = vsel %vm740, %v2535, %v2536
  %v2552 = vsel %vm740, %v2534, %v2535
  %v2553 = vsel %vm740, %v2533, %v2534
  %v2554 = vsel %vm740, %v2532, %v2533
  %v2555 = vsel %vm740, %v2531, %v2532
  %v2556 = vsel %vm740, %v2530, %v2531
  %v2557 = vsel %vm740, %v2529, %v2530
  %v2558 = vsel %vm740, %v2528, %v2529
  %v2559 = vsel %vm740, %v2527, %v2528
  %v2560 = vsel %vm740, %v2526, %v2527
  %v2561 = vsel %vm740, %v2543, %v2526
  %s2562 = scalar_lea.vmem %s7, 96
  %v2563 = vld [vmem:[%s2562] sm:$0xff]
  %v2564 = vld [vmem:[%s2562 + $0x8] sm:$0xff]
  %v2565 = vld [vmem:[%s2562 + $0x10] sm:$0xff]
  %v2566 = vld [vmem:[%s2562 + $0x18] sm:$0xff]
  %v2568 = vsel %vm2127, %v2560, 0
  %v2571 = vsel %vm2127, %v2559, 0
  %v2574 = vsel %vm2127, %v2558, 0
  %v2577 = vsel %vm2127, %v2557, 0
  %v2580 = vsel %vm2127, %v2556, 0
  %v2583 = vsel %vm2127, %v2555, 0
  %v2586 = vsel %vm2127, %v2554, 0
  %v2589 = vsel %vm2127, %v2553, 0
  %v2592 = vsel %vm2127, %v2552, 0
  %v2595 = vsel %vm2127, %v2551, 0
  %v2598 = vsel %vm2127, %v2550, 0
  %v2601 = vsel %vm2127, %v2549, 0
  %v2604 = vsel %vm2127, %v2548, 0
  %v2607 = vsel %vm2127, %v2547, 0
  %v2610 = vsel %vm2127, %v2546, 0
  %v2613 = vsel %vm2127, %v2545, 0
  %v2616 = vsel %vm2127, %v2544, 0
  %v2619 = vsel %vm2127, %v2561, 0
  %2621 = vmatpush.msra.mxu0 0.0
  %2622 = vmatpush.msra.mxu0 0.0
  %2623 = vmatpush.msra.mxu0 0.0
  %2624 = vmatpush.msra.mxu0 0.0
  %2625 = vmatpush.msra.mxu0 0.0
  %2626 = vmatpush.msra.mxu0 0.0
  %2627 = vmatpush.msra.mxu0 0.0
  %2628 = vmatpush.msra.mxu0 0.0
  %2629 = vmatpush.msra.mxu0 0.0
  %2630 = vmatpush.msra.mxu0 0.0
  %2631 = vmatpush.msra.mxu0 0.0
  %2632 = vmatpush.msra.mxu0 0.0
  %2633 = vmatpush.msra.mxu0 %v2566
  %2634 = vmatpush.msra.mxu0 %v2565
  %2635 = vmatpush.msra.mxu0 %v2564
  %2636 = vmatpush.msra.mxu0 %v2563
  %2637 = vmatmul.f32.gmra.mxu0 %v2568
  %v2638 = vpop.f32.mrf.mxu0
  %v2639 = vadd.f32 0.0, %v2638
  %2640 = vmatmul.f32.gmra.mxu0 %v2571
  %v2641 = vpop.f32.mrf.mxu0
  %v2642 = vadd.f32 0.0, %v2641
  %2643 = vmatmul.f32.gmra.mxu0 %v2574
  %v2644 = vpop.f32.mrf.mxu0
  %v2645 = vadd.f32 0.0, %v2644
  %2646 = vmatmul.f32.gmra.mxu0 %v2577
  %v2647 = vpop.f32.mrf.mxu0
  %v2648 = vadd.f32 0.0, %v2647
  %2649 = vmatmul.f32.gmra.mxu0 %v2580
  %v2650 = vpop.f32.mrf.mxu0
  %v2651 = vadd.f32 0.0, %v2650
  %2652 = vmatmul.f32.gmra.mxu0 %v2583
  %v2653 = vpop.f32.mrf.mxu0
  %v2654 = vadd.f32 0.0, %v2653
  %2655 = vmatmul.f32.gmra.mxu0 %v2586
  %v2656 = vpop.f32.mrf.mxu0
  %v2657 = vadd.f32 0.0, %v2656
  %2658 = vmatmul.f32.gmra.mxu0 %v2589
  %v2659 = vpop.f32.mrf.mxu0
  %v2660 = vadd.f32 0.0, %v2659
  %2661 = vmatmul.f32.gmra.mxu0 %v2592
  %v2662 = vpop.f32.mrf.mxu0
  %v2663 = vadd.f32 0.0, %v2662
  %2664 = vmatmul.f32.gmra.mxu0 %v2595
  %v2665 = vpop.f32.mrf.mxu0
  %v2666 = vadd.f32 0.0, %v2665
  %2667 = vmatmul.f32.gmra.mxu0 %v2598
  %v2668 = vpop.f32.mrf.mxu0
  %v2669 = vadd.f32 0.0, %v2668
  %2670 = vmatmul.f32.gmra.mxu0 %v2601
  %v2671 = vpop.f32.mrf.mxu0
  %v2672 = vadd.f32 0.0, %v2671
  %2673 = vmatmul.f32.gmra.mxu0 %v2604
  %v2674 = vpop.f32.mrf.mxu0
  %v2675 = vadd.f32 0.0, %v2674
  %2676 = vmatmul.f32.gmra.mxu0 %v2607
  %v2677 = vpop.f32.mrf.mxu0
  %v2678 = vadd.f32 0.0, %v2677
  %2679 = vmatmul.f32.gmra.mxu0 %v2610
  %v2680 = vpop.f32.mrf.mxu0
  %v2681 = vadd.f32 0.0, %v2680
  %2682 = vmatmul.f32.gmra.mxu0 %v2613
  %v2683 = vpop.f32.mrf.mxu0
  %v2684 = vadd.f32 0.0, %v2683
  %2685 = vmatmul.f32.gmra.mxu0 %v2616
  %v2686 = vpop.f32.mrf.mxu0
  %v2687 = vadd.f32 0.0, %v2686
  %2688 = vmatmul.f32.gmra.mxu0 %v2619
  %v2689 = vpop.f32.mrf.mxu0
  %v2690 = vadd.f32 0.0, %v2689
  %2691 = vdwg.mxu0
  %v2692 = vadd.f32 %v2508, %v2639
  %v2693 = vadd.f32 %v2509, %v2642
  %v2694 = vadd.f32 %v2510, %v2645
  %v2695 = vadd.f32 %v2511, %v2648
  %v2696 = vadd.f32 %v2512, %v2651
  %v2697 = vadd.f32 %v2513, %v2654
  %v2698 = vadd.f32 %v2514, %v2657
  %v2699 = vadd.f32 %v2515, %v2660
  %v2700 = vadd.f32 %v2516, %v2663
  %v2701 = vadd.f32 %v2517, %v2666
  %v2702 = vadd.f32 %v2518, %v2669
  %v2703 = vadd.f32 %v2519, %v2672
  %v2704 = vadd.f32 %v2520, %v2675
  %v2705 = vadd.f32 %v2521, %v2678
  %v2706 = vadd.f32 %v2522, %v2681
  %v2707 = vadd.f32 %v2523, %v2684
  %v2708 = vadd.f32 %v2524, %v2687
  %v2709 = vadd.f32 %v2525, %v2690
  %v2710 = vrot.slane %v2028, 2
  %v2711 = vrot.slane %v2029, 2
  %v2712 = vrot.slane %v2030, 2
  %v2713 = vrot.slane %v2031, 2
  %v2714 = vrot.slane %v2032, 2
  %v2715 = vrot.slane %v2033, 2
  %v2716 = vrot.slane %v2034, 2
  %v2717 = vrot.slane %v2035, 2
  %v2718 = vrot.slane %v2036, 2
  %v2719 = vrot.slane %v2037, 2
  %v2720 = vrot.slane %v2038, 2
  %v2721 = vrot.slane %v2039, 2
  %v2722 = vrot.slane %v2040, 2
  %v2723 = vrot.slane %v2041, 2
  %v2724 = vrot.slane %v2042, 2
  %v2725 = vrot.slane %v2043, 2
  %v2726 = vrot.slane %v2044, 2
  %v2727 = vrot.slane %v2045, 2
  %v2728 = vsel %vm925, %v2726, %v2727
  %v2729 = vsel %vm925, %v2725, %v2726
  %v2730 = vsel %vm925, %v2724, %v2725
  %v2731 = vsel %vm925, %v2723, %v2724
  %v2732 = vsel %vm925, %v2722, %v2723
  %v2733 = vsel %vm925, %v2721, %v2722
  %v2734 = vsel %vm925, %v2720, %v2721
  %v2735 = vsel %vm925, %v2719, %v2720
  %v2736 = vsel %vm925, %v2718, %v2719
  %v2737 = vsel %vm925, %v2717, %v2718
  %v2738 = vsel %vm925, %v2716, %v2717
  %v2739 = vsel %vm925, %v2715, %v2716
  %v2740 = vsel %vm925, %v2714, %v2715
  %v2741 = vsel %vm925, %v2713, %v2714
  %v2742 = vsel %vm925, %v2712, %v2713
  %v2743 = vsel %vm925, %v2711, %v2712
  %v2744 = vsel %vm925, %v2710, %v2711
  %v2745 = vsel %vm925, %v2727, %v2710
  %s2746 = scalar_lea.vmem %s7, 128
  %v2747 = vld [vmem:[%s2746] sm:$0xff]
  %v2748 = vld [vmem:[%s2746 + $0x8] sm:$0xff]
  %v2749 = vld [vmem:[%s2746 + $0x10] sm:$0xff]
  %v2750 = vld [vmem:[%s2746 + $0x18] sm:$0xff]
  %v2752 = vsel %vm2127, %v2744, 0
  %v2755 = vsel %vm2127, %v2743, 0
  %v2758 = vsel %vm2127, %v2742, 0
  %v2761 = vsel %vm2127, %v2741, 0
  %v2764 = vsel %vm2127, %v2740, 0
  %v2767 = vsel %vm2127, %v2739, 0
  %v2770 = vsel %vm2127, %v2738, 0
  %v2773 = vsel %vm2127, %v2737, 0
  %v2776 = vsel %vm2127, %v2736, 0
  %v2779 = vsel %vm2127, %v2735, 0
  %v2782 = vsel %vm2127, %v2734, 0
  %v2785 = vsel %vm2127, %v2733, 0
  %v2788 = vsel %vm2127, %v2732, 0
  %v2791 = vsel %vm2127, %v2731, 0
  %v2794 = vsel %vm2127, %v2730, 0
  %v2797 = vsel %vm2127, %v2729, 0
  %v2800 = vsel %vm2127, %v2728, 0
  %v2803 = vsel %vm2127, %v2745, 0
  %2805 = vmatpush.msra.mxu0 0.0
  %2806 = vmatpush.msra.mxu0 0.0
  %2807 = vmatpush.msra.mxu0 0.0
  %2808 = vmatpush.msra.mxu0 0.0
  %2809 = vmatpush.msra.mxu0 0.0
  %2810 = vmatpush.msra.mxu0 0.0
  %2811 = vmatpush.msra.mxu0 0.0
  %2812 = vmatpush.msra.mxu0 0.0
  %2813 = vmatpush.msra.mxu0 0.0
  %2814 = vmatpush.msra.mxu0 0.0
  %2815 = vmatpush.msra.mxu0 0.0
  %2816 = vmatpush.msra.mxu0 0.0
  %2817 = vmatpush.msra.mxu0 %v2750
  %2818 = vmatpush.msra.mxu0 %v2749
  %2819 = vmatpush.msra.mxu0 %v2748
  %2820 = vmatpush.msra.mxu0 %v2747
  %2821 = vmatmul.f32.gmra.mxu0 %v2752
  %v2822 = vpop.f32.mrf.mxu0
  %v2823 = vadd.f32 0.0, %v2822
  %2824 = vmatmul.f32.gmra.mxu0 %v2755
  %v2825 = vpop.f32.mrf.mxu0
  %v2826 = vadd.f32 0.0, %v2825
  %2827 = vmatmul.f32.gmra.mxu0 %v2758
  %v2828 = vpop.f32.mrf.mxu0
  %v2829 = vadd.f32 0.0, %v2828
  %2830 = vmatmul.f32.gmra.mxu0 %v2761
  %v2831 = vpop.f32.mrf.mxu0
  %v2832 = vadd.f32 0.0, %v2831
  %2833 = vmatmul.f32.gmra.mxu0 %v2764
  %v2834 = vpop.f32.mrf.mxu0
  %v2835 = vadd.f32 0.0, %v2834
  %2836 = vmatmul.f32.gmra.mxu0 %v2767
  %v2837 = vpop.f32.mrf.mxu0
  %v2838 = vadd.f32 0.0, %v2837
  %2839 = vmatmul.f32.gmra.mxu0 %v2770
  %v2840 = vpop.f32.mrf.mxu0
  %v2841 = vadd.f32 0.0, %v2840
  %2842 = vmatmul.f32.gmra.mxu0 %v2773
  %v2843 = vpop.f32.mrf.mxu0
  %v2844 = vadd.f32 0.0, %v2843
  %2845 = vmatmul.f32.gmra.mxu0 %v2776
  %v2846 = vpop.f32.mrf.mxu0
  %v2847 = vadd.f32 0.0, %v2846
  %2848 = vmatmul.f32.gmra.mxu0 %v2779
  %v2849 = vpop.f32.mrf.mxu0
  %v2850 = vadd.f32 0.0, %v2849
  %2851 = vmatmul.f32.gmra.mxu0 %v2782
  %v2852 = vpop.f32.mrf.mxu0
  %v2853 = vadd.f32 0.0, %v2852
  %2854 = vmatmul.f32.gmra.mxu0 %v2785
  %v2855 = vpop.f32.mrf.mxu0
  %v2856 = vadd.f32 0.0, %v2855
  %2857 = vmatmul.f32.gmra.mxu0 %v2788
  %v2858 = vpop.f32.mrf.mxu0
  %v2859 = vadd.f32 0.0, %v2858
  %2860 = vmatmul.f32.gmra.mxu0 %v2791
  %v2861 = vpop.f32.mrf.mxu0
  %v2862 = vadd.f32 0.0, %v2861
  %2863 = vmatmul.f32.gmra.mxu0 %v2794
  %v2864 = vpop.f32.mrf.mxu0
  %v2865 = vadd.f32 0.0, %v2864
  %2866 = vmatmul.f32.gmra.mxu0 %v2797
  %v2867 = vpop.f32.mrf.mxu0
  %v2868 = vadd.f32 0.0, %v2867
  %2869 = vmatmul.f32.gmra.mxu0 %v2800
  %v2870 = vpop.f32.mrf.mxu0
  %v2871 = vadd.f32 0.0, %v2870
  %2872 = vmatmul.f32.gmra.mxu0 %v2803
  %v2873 = vpop.f32.mrf.mxu0
  %v2874 = vadd.f32 0.0, %v2873
  %2875 = vdwg.mxu0
  %v2876 = vadd.f32 %v2692, %v2823
  %v2877 = vadd.f32 %v2693, %v2826
  %v2878 = vadd.f32 %v2694, %v2829
  %v2879 = vadd.f32 %v2695, %v2832
  %v2880 = vadd.f32 %v2696, %v2835
  %v2881 = vadd.f32 %v2697, %v2838
  %v2882 = vadd.f32 %v2698, %v2841
  %v2883 = vadd.f32 %v2699, %v2844
  %v2884 = vadd.f32 %v2700, %v2847
  %v2885 = vadd.f32 %v2701, %v2850
  %v2886 = vadd.f32 %v2702, %v2853
  %v2887 = vadd.f32 %v2703, %v2856
  %v2888 = vadd.f32 %v2704, %v2859
  %v2889 = vadd.f32 %v2705, %v2862
  %v2890 = vadd.f32 %v2706, %v2865
  %v2891 = vadd.f32 %v2707, %v2868
  %v2892 = vadd.f32 %v2708, %v2871
  %v2893 = vadd.f32 %v2709, %v2874
  %v2894 = vld [vmem:[%s8] sm:$0x1]
  %v2896 = vperm.slane %v2894, 0
  %v2898 = vadd.f32 %v2876, %v2896
  %v2899 = vadd.f32 %v2877, %v2896
  %v2900 = vadd.f32 %v2878, %v2896
  %v2901 = vadd.f32 %v2879, %v2896
  %v2902 = vadd.f32 %v2880, %v2896
  %v2903 = vadd.f32 %v2881, %v2896
  %v2904 = vadd.f32 %v2882, %v2896
  %v2905 = vadd.f32 %v2883, %v2896
  %v2906 = vadd.f32 %v2884, %v2896
  %v2907 = vadd.f32 %v2885, %v2896
  %v2908 = vadd.f32 %v2886, %v2896
  %v2909 = vadd.f32 %v2887, %v2896
  %v2910 = vadd.f32 %v2888, %v2896
  %v2911 = vadd.f32 %v2889, %v2896
  %v2912 = vadd.f32 %v2890, %v2896
  %v2913 = vadd.f32 %v2891, %v2896
  %v2914 = vadd.f32 %v2892, %v2896
  %v2915 = vadd.f32 %v2893, %v2896
  %v2916 = vmax.f32 %v2898, 0.0
  %v2917 = vmax.f32 %v2899, 0.0
  %v2918 = vmax.f32 %v2900, 0.0
  %v2919 = vmax.f32 %v2901, 0.0
  %v2920 = vmax.f32 %v2902, 0.0
  %v2921 = vmax.f32 %v2903, 0.0
  %v2922 = vmax.f32 %v2904, 0.0
  %v2923 = vmax.f32 %v2905, 0.0
  %v2924 = vmax.f32 %v2906, 0.0
  %v2925 = vmax.f32 %v2907, 0.0
  %v2926 = vmax.f32 %v2908, 0.0
  %v2927 = vmax.f32 %v2909, 0.0
  %v2928 = vmax.f32 %v2910, 0.0
  %v2929 = vmax.f32 %v2911, 0.0
  %v2930 = vmax.f32 %v2912, 0.0
  %v2931 = vmax.f32 %v2913, 0.0
  %v2932 = vmax.f32 %v2914, 0.0
  %v2933 = vmax.f32 %v2915, 0.0
  %v2934 = vmul.f32 %v2916, %v230
  %v2935 = vmul.f32 %v2917, %v231
  %v2936 = vmul.f32 %v2918, %v232
  %v2937 = vmul.f32 %v2919, %v233
  %v2938 = vmul.f32 %v2920, %v234
  %v2939 = vmul.f32 %v2921, %v235
  %v2940 = vmul.f32 %v2922, %v236
  %v2941 = vmul.f32 %v2923, %v237
  %v2942 = vmul.f32 %v2924, %v238
  %v2943 = vmul.f32 %v2925, %v230
  %v2944 = vmul.f32 %v2926, %v231
  %v2945 = vmul.f32 %v2927, %v232
  %v2946 = vmul.f32 %v2928, %v233
  %v2947 = vmul.f32 %v2929, %v234
  %v2948 = vmul.f32 %v2930, %v235
  %v2949 = vmul.f32 %v2931, %v236
  %v2950 = vmul.f32 %v2932, %v237
  %v2951 = vmul.f32 %v2933, %v238
  %vm2952 = vcmask 523264
  %v2953 = vsel %vm2952, %v2934, -inf
  %v2954 = vsel %vm2952, %v2935, -inf
  %v2955 = vsel %vm2952, %v2936, -inf
  %v2956 = vmax.f32 %v2953, %v2955
  %v2957 = vsel %vm2952, %v2937, -inf
  %v2958 = vmax.f32 %v2954, %v2957
  %v2959 = vsel %vm2952, %v2938, -inf
  %v2960 = vmax.f32 %v2956, %v2959
  %v2961 = vsel %vm2952, %v2939, -inf
  %v2962 = vmax.f32 %v2958, %v2961
  %v2963 = vsel %vm2952, %v2940, -inf
  %v2964 = vmax.f32 %v2960, %v2963
  %v2965 = vsel %vm2952, %v2941, -inf
  %v2966 = vmax.f32 %v2962, %v2965
  %v2967 = vsel %vm2952, %v2942, -inf
  %v2968 = vmax.f32 %v2964, %v2967
  %v2969 = vmax.f32 %v2968, %v2966
  %v2970 = vrot.slane %v2969, 4
  %v2971 = vmax.f32 %v2969, %v2970
  %v2972 = vrot.slane %v2971, 2
  %v2973 = vmax.f32 %v2971, %v2972
  %v2974 = vrot.slane %v2973, 1
  %v2975 = vmax.f32 %v2973, %v2974
  %v2976 = vsel %vm2952, %v2943, -inf
  %v2977 = vsel %vm2952, %v2944, -inf
  %v2978 = vsel %vm2952, %v2945, -inf
  %v2979 = vmax.f32 %v2976, %v2978
  %v2980 = vsel %vm2952, %v2946, -inf
  %v2981 = vmax.f32 %v2977, %v2980
  %v2982 = vsel %vm2952, %v2947, -inf
  %v2983 = vmax.f32 %v2979, %v2982
  %v2984 = vsel %vm2952, %v2948, -inf
  %v2985 = vmax.f32 %v2981, %v2984
  %v2986 = vsel %vm2952, %v2949, -inf
  %v2987 = vmax.f32 %v2983, %v2986
  %v2988 = vsel %vm2952, %v2950, -inf
  %v2989 = vmax.f32 %v2985, %v2988
  %v2990 = vsel %vm2952, %v2951, -inf
  %v2991 = vmax.f32 %v2987, %v2990
  %v2992 = vmax.f32 %v2991, %v2989
  %v2993 = vrot.slane %v2992, 4
  %v2994 = vmax.f32 %v2992, %v2993
  %v2995 = vrot.slane %v2994, 2
  %v2996 = vmax.f32 %v2994, %v2995
  %v2997 = vrot.slane %v2996, 1
  %v2998 = vmax.f32 %v2996, %v2997
  %v2999 = vld [vmem:[%s9] sm:$0x1]
  %v3001 = vperm.slane %v2999, 0
  %v3003 = vmul.f32 %v2975, %v3001
  %v3004 = vmul.f32 %v2998, %v3001
  %v3007 = vrot.slane %v3004, 7
  %vm3008 = vcmask 1041409
  %v3009 = vsel %vm3008, %v3007, %v3003
  %vm3011 = vcmask 517120
  %v3012 = vsel %vm3011, %v3009, 0.0
  %3013 = vadd.xlane.f32.xlu0 %v3012
  %v3014 = vpop.xlane.xlu0 %3013
  %v3015 = vld [vmem:[#allocation2] sm:$0x1]
  %v3017 = vperm.slane %v3015, 0
  %v3019 = vadd.f32 %v3014, %v3017
  %vm3020 = vcmask 1024
  %3021 = vst.msk [vmem:[%s11] sm:$0x3] %vm3020, %v3019
  // Predicated region
  $region46: #{tpu_custom_call.1} parent=0 // pred_check
    _
  $region47: #{tpu_custom_call.1} parent=0 // pred_check_branch
    %3023 = sbr.rel (0) target = $region49
  $region48: #{tpu_custom_call.1} parent=0 // pred_region
    _
  $region49: #{tpu_custom_call.1} parent=0 // pred_fallthru
    _
  // Predicated region
  $region50: #{tpu_custom_call.1} parent=0 // pred_check
    _
  $region51: #{tpu_custom_call.1} parent=0 // pred_check_branch
    %3025 = sbr.rel (0) target = $region53
  $region52: #{tpu_custom_call.1} parent=0 // pred_region
    _
  $region53: #{tpu_custom_call.1} parent=0 // pred_fallthru
    _

</llo_original>
